<compile_context>
chip_gen: v7x
topology: tpu7x:2x2x1
jax: 0.10.0
libtpu: 0.0.40
codegen_flags: <defaults>
</compile_context>

<pallas_src>
import jax
import jax.numpy as jnp
from jax import lax
from jax.experimental import pallas as pl
from jax.experimental.pallas import tpu as pltpu


def _sigmoid(z):
    # exp + reciprocal lower to the EUP (separate bundle slot from the VPU).
    return 1.0 / (1.0 + jnp.exp(-z))


def _lstm_multitask_kernel(x_ref, wih_ref, whh_ref, b_ref, wout_ref, bout_ref,
                           out_ref, xproj_ref, hall_ref):
    # x_ref:    (T, in)        wih_ref: (in, 4H)      whh_ref: (H, 4H)
    # b_ref:    (1, 4H)        wout_ref: (H, N_pad)   bout_ref: (1, N_pad)
    # out_ref:  (T, N_pad)     xproj_ref: (T, 4H)     hall_ref: (T, H)
    T, H = hall_ref.shape

    # (1) time-parallel input projection: all T steps in one MXU matmul.
    xproj_ref[...] = (
        jnp.dot(x_ref[...], wih_ref[...], preferred_element_type=jnp.float32)
        + b_ref[...])

    # (2) inherently-sequential LSTM recurrence (PyTorch gate order: i, f, g, o).
    def step(t, carry):
        h, c = carry                                               # (1, H) each
        gates = xproj_ref[pl.ds(t, 1), :] + jnp.dot(
            h, whh_ref[...], preferred_element_type=jnp.float32)   # (1, 4H)
        i = _sigmoid(gates[:, 0 * H:1 * H])
        f = _sigmoid(gates[:, 1 * H:2 * H])
        g = jnp.tanh(gates[:, 2 * H:3 * H])
        o = _sigmoid(gates[:, 3 * H:4 * H])
        c_new = f * c + i * g
        h_new = o * jnp.tanh(c_new)
        hall_ref[pl.ds(t, 1), :] = h_new
        return h_new, c_new

    zero = jnp.zeros((1, H), dtype=jnp.float32)
    if T <= 32:
        # short sequence: fully unroll at trace time for scheduler visibility
        carry = (zero, zero)
        for t in range(T):
            carry = step(t, carry)
    else:
        lax.fori_loop(0, T, step, (zero, zero))

    # TODO(synk): the two nn.Dropout layers are identity in eval mode; training
    # dropout with torch RNG parity is not reproduced.

    # (3) time-parallel, lane-dense (padded-to-128) fused projection: all 7
    #     heads share one (T, H) x (H, N_pad) matmul and one unmasked store.
    out_ref[...] = (
        jnp.dot(hall_ref[...], wout_ref[...], preferred_element_type=jnp.float32)
        + bout_ref[...])


def lstm_multitask_forward(features, w_ih, w_hh, b_ih, b_hh, proj_ws, proj_bs):
    """features: (T, input_size). Returns list of (T, n_i) logits (7 heads)."""
    x = jnp.asarray(features, jnp.float32)
    T, in_dim = x.shape
    H = w_hh.shape[1]
    assert w_ih.shape == (4 * H, in_dim) and w_hh.shape == (4 * H, H)

    # --- plain-JAX layout plumbing: transpose / pack / lane-pad the weights ---
    wih_t = jnp.asarray(w_ih, jnp.float32).T                       # (in, 4H)
    whh_t = jnp.asarray(w_hh, jnp.float32).T                       # (H, 4H)
    b = (jnp.asarray(b_ih, jnp.float32)
         + jnp.asarray(b_hh, jnp.float32)).reshape(1, 4 * H)

    sizes = [int(w.shape[0]) for w in proj_ws]
    n_tot = sum(sizes)
    n_pad = ((n_tot + 127) // 128) * 128                           # lane-dense out
    wout = jnp.concatenate(
        [jnp.asarray(w, jnp.float32).T for w in proj_ws], axis=1)  # (H, n_tot)
    wout = jnp.pad(wout, ((0, 0), (0, n_pad - n_tot)))
    bout = jnp.concatenate(
        [jnp.asarray(bb, jnp.float32) for bb in proj_bs]).reshape(1, n_tot)
    bout = jnp.pad(bout, ((0, 0), (0, n_pad - n_tot)))

    out = pl.pallas_call(
        _lstm_multitask_kernel,
        out_shape=jax.ShapeDtypeStruct((T, n_pad), jnp.float32),
        in_specs=[pl.BlockSpec(memory_space=pltpu.MemorySpace.VMEM)] * 6,
        out_specs=pl.BlockSpec(memory_space=pltpu.MemorySpace.VMEM),
        scratch_shapes=[pltpu.VMEM((T, 4 * H), jnp.float32),   # gate pre-acts
                        pltpu.VMEM((T, H), jnp.float32)],      # all hidden states
    )(x, wih_t, whh_t, b, wout, bout)

    logits_cat = out[:, :n_tot]                                    # drop lane pad
    splits, acc = [], 0
    for s in sizes[:-1]:
        acc += s
        splits.append(acc)
    return jnp.split(logits_cat, splits, axis=1)


if __name__ == "__main__":
    # small shapes consistent with the module's forward: features is (T, input)
    T, in_dim, H = 8, 16, 32
    num_labels_per_category = [3, 3, 2, 3, 3, 3, 3]

    key = jax.random.PRNGKey(0)
    ks = jax.random.split(key, 5 + 2 * len(num_labels_per_category))
    features = jax.random.normal(ks[0], (T, in_dim), jnp.float32)
    w_ih = jax.random.normal(ks[1], (4 * H, in_dim), jnp.float32) * 0.1
    w_hh = jax.random.normal(ks[2], (4 * H, H), jnp.float32) * 0.1
    b_ih = jax.random.normal(ks[3], (4 * H,), jnp.float32) * 0.1
    b_hh = jax.random.normal(ks[4], (4 * H,), jnp.float32) * 0.1
    proj_ws = [jax.random.normal(ks[5 + 2 * i], (n, H), jnp.float32) * 0.1
               for i, n in enumerate(num_labels_per_category)]
    proj_bs = [jax.random.normal(ks[6 + 2 * i], (n,), jnp.float32) * 0.1
               for i, n in enumerate(num_labels_per_category)]

    logits = lstm_multitask_forward(features, w_ih, w_hh, b_ih, b_hh,
                                    proj_ws, proj_bs)
    logits = jax.block_until_ready(logits)

    # pure-JAX reference (same math as torch nn.LSTM, gate order i, f, g, o)
    def ref_forward(x):
        def step(carry, xt):
            h, c = carry
            z = (jnp.dot(xt, w_ih.T, precision=lax.Precision.HIGHEST) + b_ih
                 + jnp.dot(h, w_hh.T, precision=lax.Precision.HIGHEST) + b_hh)
            i = jax.nn.sigmoid(z[0 * H:1 * H])
            f = jax.nn.sigmoid(z[1 * H:2 * H])
            g = jnp.tanh(z[2 * H:3 * H])
            o = jax.nn.sigmoid(z[3 * H:4 * H])
            c_new = f * c + i * g
            h_new = o * jnp.tanh(c_new)
            return (h_new, c_new), h_new
        init = (jnp.zeros((H,), jnp.float32), jnp.zeros((H,), jnp.float32))
        _, hs = lax.scan(step, init, x)                            # (T, H)
        return [jnp.dot(hs, w.T, precision=lax.Precision.HIGHEST) + b
                for w, b in zip(proj_ws, proj_bs)]

    refs = ref_forward(features)
    ok = all(bool(jnp.allclose(lg, rf, atol=1e-3, rtol=1e-3))
             for lg, rf in zip(logits, refs))
    assert ok, "mismatch vs reference"
    print("KERNEL_OK")
</pallas_src>

<mosaic_0001>
module attributes {stable_mosaic.version = 11 : i64} {
  func.func @_lstm_multitask_kernel(%arg0: memref<8x16xf32, #tpu.memory_space<vmem>>, %arg1: memref<16x128xf32, #tpu.memory_space<vmem>>, %arg2: memref<32x128xf32, #tpu.memory_space<vmem>>, %arg3: memref<1x128xf32, #tpu.memory_space<vmem>>, %arg4: memref<32x128xf32, #tpu.memory_space<vmem>>, %arg5: memref<1x128xf32, #tpu.memory_space<vmem>>, %arg6: memref<8x128xf32, #tpu.memory_space<vmem>>, %arg7: memref<8x128xf32, #tpu.memory_space<vmem>>, %arg8: memref<8x32xf32, #tpu.memory_space<vmem>>) attributes {dimension_semantics = [], scalar_prefetch = 0 : i64, scratch_operands = 2 : i64, tpu.core_type = #tpu.core_type<tc>} {
    %c0 = arith.constant 0 : index
    %c0_0 = arith.constant 0 : index
    %0 = vector.load %arg0[%c0, %c0_0] : memref<8x16xf32, #tpu.memory_space<vmem>>, vector<8x16xf32>
    %c0_1 = arith.constant 0 : index
    %c0_2 = arith.constant 0 : index
    %1 = vector.load %arg1[%c0_1, %c0_2] : memref<16x128xf32, #tpu.memory_space<vmem>>, vector<16x128xf32>
    %cst = arith.constant dense<0.000000e+00> : vector<8x128xf32>
    %2 = tpu.matmul %0, %1, %cst {dimension_numbers = #tpu.dot_dimension_numbers<[1], [0], [0], [1], [0, 0, 1, 1], [], []>} : vector<8x16xf32>, vector<16x128xf32>, vector<8x128xf32> -> vector<8x128xf32>
    %c0_3 = arith.constant 0 : index
    %c0_4 = arith.constant 0 : index
    %3 = vector.load %arg3[%c0_3, %c0_4] : memref<1x128xf32, #tpu.memory_space<vmem>>, vector<1x128xf32>
    %4 = vector.broadcast %3 : vector<1x128xf32> to vector<8x128xf32>
    %5 = arith.addf %2, %4 : vector<8x128xf32>
    %c0_5 = arith.constant 0 : index
    %c0_6 = arith.constant 0 : index
    %6 = vector.load %arg7[%c0_5, %c0_6] : memref<8x128xf32, #tpu.memory_space<vmem>>, vector<8x128xf32>
    tpu.vector_store %arg7[%c0_5, %c0_6], %5 {strides = array<i32>} : memref<8x128xf32, #tpu.memory_space<vmem>>, vector<8x128xf32>,
    %cst_7 = arith.constant 0.000000e+00 : f32
    %7 = vector.broadcast %cst_7 : f32 to vector<1x32xf32>
    %c0_8 = arith.constant 0 : index
    %c0_9 = arith.constant 0 : index
    %8 = vector.load %arg7[%c0_8, %c0_9] : memref<8x128xf32, #tpu.memory_space<vmem>>, vector<1x128xf32>
    %c0_10 = arith.constant 0 : index
    %c0_11 = arith.constant 0 : index
    %9 = vector.load %arg2[%c0_10, %c0_11] : memref<32x128xf32, #tpu.memory_space<vmem>>, vector<32x128xf32>
    %cst_12 = arith.constant dense<0.000000e+00> : vector<1x128xf32>
    %10 = tpu.matmul %7, %9, %cst_12 {dimension_numbers = #tpu.dot_dimension_numbers<[1], [0], [0], [1], [0, 0, 1, 1], [], []>} : vector<1x32xf32>, vector<32x128xf32>, vector<1x128xf32> -> vector<1x128xf32>
    %11 = arith.addf %8, %10 : vector<1x128xf32>
    %12 = vector.extract_strided_slice %11 {offsets = [0, 0], sizes = [1, 32], strides = [1, 1]} : vector<1x128xf32> to vector<1x32xf32>
    %cst_13 = arith.constant 0.000000e+00 : f32
    %13 = vector.broadcast %cst_13 : f32 to vector<1x32xf32>
    %14 = arith.subf %13, %12 : vector<1x32xf32>
    %15 = math.exp %14 : vector<1x32xf32>
    %cst_14 = arith.constant 1.000000e+00 : f32
    %16 = vector.broadcast %cst_14 : f32 to vector<1x32xf32>
    %17 = arith.addf %16, %15 : vector<1x32xf32>
    %cst_15 = arith.constant 1.000000e+00 : f32
    %18 = vector.broadcast %cst_15 : f32 to vector<1x32xf32>
    %19 = arith.divf %18, %17 : vector<1x32xf32>
    %20 = vector.extract_strided_slice %11 {offsets = [0, 32], sizes = [1, 32], strides = [1, 1]} : vector<1x128xf32> to vector<1x32xf32>
    %cst_16 = arith.constant 0.000000e+00 : f32
    %21 = vector.broadcast %cst_16 : f32 to vector<1x32xf32>
    %22 = arith.subf %21, %20 : vector<1x32xf32>
    %23 = math.exp %22 : vector<1x32xf32>
    %cst_17 = arith.constant 1.000000e+00 : f32
    %24 = vector.broadcast %cst_17 : f32 to vector<1x32xf32>
    %25 = arith.addf %24, %23 : vector<1x32xf32>
    %cst_18 = arith.constant 1.000000e+00 : f32
    %26 = vector.broadcast %cst_18 : f32 to vector<1x32xf32>
    %27 = arith.divf %26, %25 : vector<1x32xf32>
    %28 = vector.extract_strided_slice %11 {offsets = [0, 64], sizes = [1, 32], strides = [1, 1]} : vector<1x128xf32> to vector<1x32xf32>
    %29 = math.tanh %28 : vector<1x32xf32>
    %30 = vector.extract_strided_slice %11 {offsets = [0, 96], sizes = [1, 32], strides = [1, 1]} : vector<1x128xf32> to vector<1x32xf32>
    %cst_19 = arith.constant 0.000000e+00 : f32
    %31 = vector.broadcast %cst_19 : f32 to vector<1x32xf32>
    %32 = arith.subf %31, %30 : vector<1x32xf32>
    %33 = math.exp %32 : vector<1x32xf32>
    %cst_20 = arith.constant 1.000000e+00 : f32
    %34 = vector.broadcast %cst_20 : f32 to vector<1x32xf32>
    %35 = arith.addf %34, %33 : vector<1x32xf32>
    %cst_21 = arith.constant 1.000000e+00 : f32
    %36 = vector.broadcast %cst_21 : f32 to vector<1x32xf32>
    %37 = arith.divf %36, %35 : vector<1x32xf32>
    %38 = arith.mulf %27, %7 : vector<1x32xf32>
    %39 = arith.mulf %19, %29 : vector<1x32xf32>
    %40 = arith.addf %38, %39 : vector<1x32xf32>
    %41 = math.tanh %40 : vector<1x32xf32>
    %42 = arith.mulf %37, %41 : vector<1x32xf32>
    %c0_22 = arith.constant 0 : index
    %c0_23 = arith.constant 0 : index
    %43 = vector.load %arg8[%c0_22, %c0_23] : memref<8x32xf32, #tpu.memory_space<vmem>>, vector<1x32xf32>
    tpu.vector_store %arg8[%c0_22, %c0_23], %42 {strides = array<i32>} : memref<8x32xf32, #tpu.memory_space<vmem>>, vector<1x32xf32>,
    %c1 = arith.constant 1 : index
    %c0_24 = arith.constant 0 : index
    %44 = vector.load %arg7[%c1, %c0_24] : memref<8x128xf32, #tpu.memory_space<vmem>>, vector<1x128xf32>
    %c0_25 = arith.constant 0 : index
    %c0_26 = arith.constant 0 : index
    %45 = vector.load %arg2[%c0_25, %c0_26] : memref<32x128xf32, #tpu.memory_space<vmem>>, vector<32x128xf32>
    %cst_27 = arith.constant dense<0.000000e+00> : vector<1x128xf32>
    %46 = tpu.matmul %42, %45, %cst_27 {dimension_numbers = #tpu.dot_dimension_numbers<[1], [0], [0], [1], [0, 0, 1, 1], [], []>} : vector<1x32xf32>, vector<32x128xf32>, vector<1x128xf32> -> vector<1x128xf32>
    %47 = arith.addf %44, %46 : vector<1x128xf32>
    %48 = vector.extract_strided_slice %47 {offsets = [0, 0], sizes = [1, 32], strides = [1, 1]} : vector<1x128xf32> to vector<1x32xf32>
    %cst_28 = arith.constant 0.000000e+00 : f32
    %49 = vector.broadcast %cst_28 : f32 to vector<1x32xf32>
    %50 = arith.subf %49, %48 : vector<1x32xf32>
    %51 = math.exp %50 : vector<1x32xf32>
    %cst_29 = arith.constant 1.000000e+00 : f32
    %52 = vector.broadcast %cst_29 : f32 to vector<1x32xf32>
    %53 = arith.addf %52, %51 : vector<1x32xf32>
    %cst_30 = arith.constant 1.000000e+00 : f32
    %54 = vector.broadcast %cst_30 : f32 to vector<1x32xf32>
    %55 = arith.divf %54, %53 : vector<1x32xf32>
    %56 = vector.extract_strided_slice %47 {offsets = [0, 32], sizes = [1, 32], strides = [1, 1]} : vector<1x128xf32> to vector<1x32xf32>
    %cst_31 = arith.constant 0.000000e+00 : f32
    %57 = vector.broadcast %cst_31 : f32 to vector<1x32xf32>
    %58 = arith.subf %57, %56 : vector<1x32xf32>
    %59 = math.exp %58 : vector<1x32xf32>
    %cst_32 = arith.constant 1.000000e+00 : f32
    %60 = vector.broadcast %cst_32 : f32 to vector<1x32xf32>
    %61 = arith.addf %60, %59 : vector<1x32xf32>
    %cst_33 = arith.constant 1.000000e+00 : f32
    %62 = vector.broadcast %cst_33 : f32 to vector<1x32xf32>
    %63 = arith.divf %62, %61 : vector<1x32xf32>
    %64 = vector.extract_strided_slice %47 {offsets = [0, 64], sizes = [1, 32], strides = [1, 1]} : vector<1x128xf32> to vector<1x32xf32>
    %65 = math.tanh %64 : vector<1x32xf32>
    %66 = vector.extract_strided_slice %47 {offsets = [0, 96], sizes = [1, 32], strides = [1, 1]} : vector<1x128xf32> to vector<1x32xf32>
    %cst_34 = arith.constant 0.000000e+00 : f32
    %67 = vector.broadcast %cst_34 : f32 to vector<1x32xf32>
    %68 = arith.subf %67, %66 : vector<1x32xf32>
    %69 = math.exp %68 : vector<1x32xf32>
    %cst_35 = arith.constant 1.000000e+00 : f32
    %70 = vector.broadcast %cst_35 : f32 to vector<1x32xf32>
    %71 = arith.addf %70, %69 : vector<1x32xf32>
    %cst_36 = arith.constant 1.000000e+00 : f32
    %72 = vector.broadcast %cst_36 : f32 to vector<1x32xf32>
    %73 = arith.divf %72, %71 : vector<1x32xf32>
    %74 = arith.mulf %63, %40 : vector<1x32xf32>
    %75 = arith.mulf %55, %65 : vector<1x32xf32>
    %76 = arith.addf %74, %75 : vector<1x32xf32>
    %77 = math.tanh %76 : vector<1x32xf32>
    %78 = arith.mulf %73, %77 : vector<1x32xf32>
    %c1_37 = arith.constant 1 : index
    %c0_38 = arith.constant 0 : index
    %79 = vector.load %arg8[%c1_37, %c0_38] : memref<8x32xf32, #tpu.memory_space<vmem>>, vector<1x32xf32>
    tpu.vector_store %arg8[%c1_37, %c0_38], %78 {strides = array<i32>} : memref<8x32xf32, #tpu.memory_space<vmem>>, vector<1x32xf32>,
    %c2 = arith.constant 2 : index
    %c0_39 = arith.constant 0 : index
    %80 = vector.load %arg7[%c2, %c0_39] : memref<8x128xf32, #tpu.memory_space<vmem>>, vector<1x128xf32>
    %c0_40 = arith.constant 0 : index
    %c0_41 = arith.constant 0 : index
    %81 = vector.load %arg2[%c0_40, %c0_41] : memref<32x128xf32, #tpu.memory_space<vmem>>, vector<32x128xf32>
    %cst_42 = arith.constant dense<0.000000e+00> : vector<1x128xf32>
    %82 = tpu.matmul %78, %81, %cst_42 {dimension_numbers = #tpu.dot_dimension_numbers<[1], [0], [0], [1], [0, 0, 1, 1], [], []>} : vector<1x32xf32>, vector<32x128xf32>, vector<1x128xf32> -> vector<1x128xf32>
    %83 = arith.addf %80, %82 : vector<1x128xf32>
    %84 = vector.extract_strided_slice %83 {offsets = [0, 0], sizes = [1, 32], strides = [1, 1]} : vector<1x128xf32> to vector<1x32xf32>
    %cst_43 = arith.constant 0.000000e+00 : f32
    %85 = vector.broadcast %cst_43 : f32 to vector<1x32xf32>
    %86 = arith.subf %85, %84 : vector<1x32xf32>
    %87 = math.exp %86 : vector<1x32xf32>
    %cst_44 = arith.constant 1.000000e+00 : f32
    %88 = vector.broadcast %cst_44 : f32 to vector<1x32xf32>
    %89 = arith.addf %88, %87 : vector<1x32xf32>
    %cst_45 = arith.constant 1.000000e+00 : f32
    %90 = vector.broadcast %cst_45 : f32 to vector<1x32xf32>
    %91 = arith.divf %90, %89 : vector<1x32xf32>
    %92 = vector.extract_strided_slice %83 {offsets = [0, 32], sizes = [1, 32], strides = [1, 1]} : vector<1x128xf32> to vector<1x32xf32>
    %cst_46 = arith.constant 0.000000e+00 : f32
    %93 = vector.broadcast %cst_46 : f32 to vector<1x32xf32>
    %94 = arith.subf %93, %92 : vector<1x32xf32>
    %95 = math.exp %94 : vector<1x32xf32>
    %cst_47 = arith.constant 1.000000e+00 : f32
    %96 = vector.broadcast %cst_47 : f32 to vector<1x32xf32>
    %97 = arith.addf %96, %95 : vector<1x32xf32>
    %cst_48 = arith.constant 1.000000e+00 : f32
    %98 = vector.broadcast %cst_48 : f32 to vector<1x32xf32>
    %99 = arith.divf %98, %97 : vector<1x32xf32>
    %100 = vector.extract_strided_slice %83 {offsets = [0, 64], sizes = [1, 32], strides = [1, 1]} : vector<1x128xf32> to vector<1x32xf32>
    %101 = math.tanh %100 : vector<1x32xf32>
    %102 = vector.extract_strided_slice %83 {offsets = [0, 96], sizes = [1, 32], strides = [1, 1]} : vector<1x128xf32> to vector<1x32xf32>
    %cst_49 = arith.constant 0.000000e+00 : f32
    %103 = vector.broadcast %cst_49 : f32 to vector<1x32xf32>
    %104 = arith.subf %103, %102 : vector<1x32xf32>
    %105 = math.exp %104 : vector<1x32xf32>
    %cst_50 = arith.constant 1.000000e+00 : f32
    %106 = vector.broadcast %cst_50 : f32 to vector<1x32xf32>
    %107 = arith.addf %106, %105 : vector<1x32xf32>
    %cst_51 = arith.constant 1.000000e+00 : f32
    %108 = vector.broadcast %cst_51 : f32 to vector<1x32xf32>
    %109 = arith.divf %108, %107 : vector<1x32xf32>
    %110 = arith.mulf %99, %76 : vector<1x32xf32>
    %111 = arith.mulf %91, %101 : vector<1x32xf32>
    %112 = arith.addf %110, %111 : vector<1x32xf32>
    %113 = math.tanh %112 : vector<1x32xf32>
    %114 = arith.mulf %109, %113 : vector<1x32xf32>
    %c2_52 = arith.constant 2 : index
    %c0_53 = arith.constant 0 : index
    %115 = vector.load %arg8[%c2_52, %c0_53] : memref<8x32xf32, #tpu.memory_space<vmem>>, vector<1x32xf32>
    tpu.vector_store %arg8[%c2_52, %c0_53], %114 {strides = array<i32>} : memref<8x32xf32, #tpu.memory_space<vmem>>, vector<1x32xf32>,
    %c3 = arith.constant 3 : index
    %c0_54 = arith.constant 0 : index
    %116 = vector.load %arg7[%c3, %c0_54] : memref<8x128xf32, #tpu.memory_space<vmem>>, vector<1x128xf32>
    %c0_55 = arith.constant 0 : index
    %c0_56 = arith.constant 0 : index
    %117 = vector.load %arg2[%c0_55, %c0_56] : memref<32x128xf32, #tpu.memory_space<vmem>>, vector<32x128xf32>
    %cst_57 = arith.constant dense<0.000000e+00> : vector<1x128xf32>
    %118 = tpu.matmul %114, %117, %cst_57 {dimension_numbers = #tpu.dot_dimension_numbers<[1], [0], [0], [1], [0, 0, 1, 1], [], []>} : vector<1x32xf32>, vector<32x128xf32>, vector<1x128xf32> -> vector<1x128xf32>
    %119 = arith.addf %116, %118 : vector<1x128xf32>
    %120 = vector.extract_strided_slice %119 {offsets = [0, 0], sizes = [1, 32], strides = [1, 1]} : vector<1x128xf32> to vector<1x32xf32>
    %cst_58 = arith.constant 0.000000e+00 : f32
    %121 = vector.broadcast %cst_58 : f32 to vector<1x32xf32>
    %122 = arith.subf %121, %120 : vector<1x32xf32>
    %123 = math.exp %122 : vector<1x32xf32>
    %cst_59 = arith.constant 1.000000e+00 : f32
    %124 = vector.broadcast %cst_59 : f32 to vector<1x32xf32>
    %125 = arith.addf %124, %123 : vector<1x32xf32>
    %cst_60 = arith.constant 1.000000e+00 : f32
    %126 = vector.broadcast %cst_60 : f32 to vector<1x32xf32>
    %127 = arith.divf %126, %125 : vector<1x32xf32>
    %128 = vector.extract_strided_slice %119 {offsets = [0, 32], sizes = [1, 32], strides = [1, 1]} : vector<1x128xf32> to vector<1x32xf32>
    %cst_61 = arith.constant 0.000000e+00 : f32
    %129 = vector.broadcast %cst_61 : f32 to vector<1x32xf32>
    %130 = arith.subf %129, %128 : vector<1x32xf32>
    %131 = math.exp %130 : vector<1x32xf32>
    %cst_62 = arith.constant 1.000000e+00 : f32
    %132 = vector.broadcast %cst_62 : f32 to vector<1x32xf32>
    %133 = arith.addf %132, %131 : vector<1x32xf32>
    %cst_63 = arith.constant 1.000000e+00 : f32
    %134 = vector.broadcast %cst_63 : f32 to vector<1x32xf32>
    %135 = arith.divf %134, %133 : vector<1x32xf32>
    %136 = vector.extract_strided_slice %119 {offsets = [0, 64], sizes = [1, 32], strides = [1, 1]} : vector<1x128xf32> to vector<1x32xf32>
    %137 = math.tanh %136 : vector<1x32xf32>
    %138 = vector.extract_strided_slice %119 {offsets = [0, 96], sizes = [1, 32], strides = [1, 1]} : vector<1x128xf32> to vector<1x32xf32>
    %cst_64 = arith.constant 0.000000e+00 : f32
    %139 = vector.broadcast %cst_64 : f32 to vector<1x32xf32>
    %140 = arith.subf %139, %138 : vector<1x32xf32>
    %141 = math.exp %140 : vector<1x32xf32>
    %cst_65 = arith.constant 1.000000e+00 : f32
    %142 = vector.broadcast %cst_65 : f32 to vector<1x32xf32>
    %143 = arith.addf %142, %141 : vector<1x32xf32>
    %cst_66 = arith.constant 1.000000e+00 : f32
    %144 = vector.broadcast %cst_66 : f32 to vector<1x32xf32>
    %145 = arith.divf %144, %143 : vector<1x32xf32>
    %146 = arith.mulf %135, %112 : vector<1x32xf32>
    %147 = arith.mulf %127, %137 : vector<1x32xf32>
    %148 = arith.addf %146, %147 : vector<1x32xf32>
    %149 = math.tanh %148 : vector<1x32xf32>
    %150 = arith.mulf %145, %149 : vector<1x32xf32>
    %c3_67 = arith.constant 3 : index
    %c0_68 = arith.constant 0 : index
    %151 = vector.load %arg8[%c3_67, %c0_68] : memref<8x32xf32, #tpu.memory_space<vmem>>, vector<1x32xf32>
    tpu.vector_store %arg8[%c3_67, %c0_68], %150 {strides = array<i32>} : memref<8x32xf32, #tpu.memory_space<vmem>>, vector<1x32xf32>,
    %c4 = arith.constant 4 : index
    %c0_69 = arith.constant 0 : index
    %152 = vector.load %arg7[%c4, %c0_69] : memref<8x128xf32, #tpu.memory_space<vmem>>, vector<1x128xf32>
    %c0_70 = arith.constant 0 : index
    %c0_71 = arith.constant 0 : index
    %153 = vector.load %arg2[%c0_70, %c0_71] : memref<32x128xf32, #tpu.memory_space<vmem>>, vector<32x128xf32>
    %cst_72 = arith.constant dense<0.000000e+00> : vector<1x128xf32>
    %154 = tpu.matmul %150, %153, %cst_72 {dimension_numbers = #tpu.dot_dimension_numbers<[1], [0], [0], [1], [0, 0, 1, 1], [], []>} : vector<1x32xf32>, vector<32x128xf32>, vector<1x128xf32> -> vector<1x128xf32>
    %155 = arith.addf %152, %154 : vector<1x128xf32>
    %156 = vector.extract_strided_slice %155 {offsets = [0, 0], sizes = [1, 32], strides = [1, 1]} : vector<1x128xf32> to vector<1x32xf32>
    %cst_73 = arith.constant 0.000000e+00 : f32
    %157 = vector.broadcast %cst_73 : f32 to vector<1x32xf32>
    %158 = arith.subf %157, %156 : vector<1x32xf32>
    %159 = math.exp %158 : vector<1x32xf32>
    %cst_74 = arith.constant 1.000000e+00 : f32
    %160 = vector.broadcast %cst_74 : f32 to vector<1x32xf32>
    %161 = arith.addf %160, %159 : vector<1x32xf32>
    %cst_75 = arith.constant 1.000000e+00 : f32
    %162 = vector.broadcast %cst_75 : f32 to vector<1x32xf32>
    %163 = arith.divf %162, %161 : vector<1x32xf32>
    %164 = vector.extract_strided_slice %155 {offsets = [0, 32], sizes = [1, 32], strides = [1, 1]} : vector<1x128xf32> to vector<1x32xf32>
    %cst_76 = arith.constant 0.000000e+00 : f32
    %165 = vector.broadcast %cst_76 : f32 to vector<1x32xf32>
    %166 = arith.subf %165, %164 : vector<1x32xf32>
    %167 = math.exp %166 : vector<1x32xf32>
    %cst_77 = arith.constant 1.000000e+00 : f32
    %168 = vector.broadcast %cst_77 : f32 to vector<1x32xf32>
    %169 = arith.addf %168, %167 : vector<1x32xf32>
    %cst_78 = arith.constant 1.000000e+00 : f32
    %170 = vector.broadcast %cst_78 : f32 to vector<1x32xf32>
    %171 = arith.divf %170, %169 : vector<1x32xf32>
    %172 = vector.extract_strided_slice %155 {offsets = [0, 64], sizes = [1, 32], strides = [1, 1]} : vector<1x128xf32> to vector<1x32xf32>
    %173 = math.tanh %172 : vector<1x32xf32>
    %174 = vector.extract_strided_slice %155 {offsets = [0, 96], sizes = [1, 32], strides = [1, 1]} : vector<1x128xf32> to vector<1x32xf32>
    %cst_79 = arith.constant 0.000000e+00 : f32
    %175 = vector.broadcast %cst_79 : f32 to vector<1x32xf32>
    %176 = arith.subf %175, %174 : vector<1x32xf32>
    %177 = math.exp %176 : vector<1x32xf32>
    %cst_80 = arith.constant 1.000000e+00 : f32
    %178 = vector.broadcast %cst_80 : f32 to vector<1x32xf32>
    %179 = arith.addf %178, %177 : vector<1x32xf32>
    %cst_81 = arith.constant 1.000000e+00 : f32
    %180 = vector.broadcast %cst_81 : f32 to vector<1x32xf32>
    %181 = arith.divf %180, %179 : vector<1x32xf32>
    %182 = arith.mulf %171, %148 : vector<1x32xf32>
    %183 = arith.mulf %163, %173 : vector<1x32xf32>
    %184 = arith.addf %182, %183 : vector<1x32xf32>
    %185 = math.tanh %184 : vector<1x32xf32>
    %186 = arith.mulf %181, %185 : vector<1x32xf32>
    %c4_82 = arith.constant 4 : index
    %c0_83 = arith.constant 0 : index
    %187 = vector.load %arg8[%c4_82, %c0_83] : memref<8x32xf32, #tpu.memory_space<vmem>>, vector<1x32xf32>
    tpu.vector_store %arg8[%c4_82, %c0_83], %186 {strides = array<i32>} : memref<8x32xf32, #tpu.memory_space<vmem>>, vector<1x32xf32>,
    %c5 = arith.constant 5 : index
    %c0_84 = arith.constant 0 : index
    %188 = vector.load %arg7[%c5, %c0_84] : memref<8x128xf32, #tpu.memory_space<vmem>>, vector<1x128xf32>
    %c0_85 = arith.constant 0 : index
    %c0_86 = arith.constant 0 : index
    %189 = vector.load %arg2[%c0_85, %c0_86] : memref<32x128xf32, #tpu.memory_space<vmem>>, vector<32x128xf32>
    %cst_87 = arith.constant dense<0.000000e+00> : vector<1x128xf32>
    %190 = tpu.matmul %186, %189, %cst_87 {dimension_numbers = #tpu.dot_dimension_numbers<[1], [0], [0], [1], [0, 0, 1, 1], [], []>} : vector<1x32xf32>, vector<32x128xf32>, vector<1x128xf32> -> vector<1x128xf32>
    %191 = arith.addf %188, %190 : vector<1x128xf32>
    %192 = vector.extract_strided_slice %191 {offsets = [0, 0], sizes = [1, 32], strides = [1, 1]} : vector<1x128xf32> to vector<1x32xf32>
    %cst_88 = arith.constant 0.000000e+00 : f32
    %193 = vector.broadcast %cst_88 : f32 to vector<1x32xf32>
    %194 = arith.subf %193, %192 : vector<1x32xf32>
    %195 = math.exp %194 : vector<1x32xf32>
    %cst_89 = arith.constant 1.000000e+00 : f32
    %196 = vector.broadcast %cst_89 : f32 to vector<1x32xf32>
    %197 = arith.addf %196, %195 : vector<1x32xf32>
    %cst_90 = arith.constant 1.000000e+00 : f32
    %198 = vector.broadcast %cst_90 : f32 to vector<1x32xf32>
    %199 = arith.divf %198, %197 : vector<1x32xf32>
    %200 = vector.extract_strided_slice %191 {offsets = [0, 32], sizes = [1, 32], strides = [1, 1]} : vector<1x128xf32> to vector<1x32xf32>
    %cst_91 = arith.constant 0.000000e+00 : f32
    %201 = vector.broadcast %cst_91 : f32 to vector<1x32xf32>
    %202 = arith.subf %201, %200 : vector<1x32xf32>
    %203 = math.exp %202 : vector<1x32xf32>
    %cst_92 = arith.constant 1.000000e+00 : f32
    %204 = vector.broadcast %cst_92 : f32 to vector<1x32xf32>
    %205 = arith.addf %204, %203 : vector<1x32xf32>
    %cst_93 = arith.constant 1.000000e+00 : f32
    %206 = vector.broadcast %cst_93 : f32 to vector<1x32xf32>
    %207 = arith.divf %206, %205 : vector<1x32xf32>
    %208 = vector.extract_strided_slice %191 {offsets = [0, 64], sizes = [1, 32], strides = [1, 1]} : vector<1x128xf32> to vector<1x32xf32>
    %209 = math.tanh %208 : vector<1x32xf32>
    %210 = vector.extract_strided_slice %191 {offsets = [0, 96], sizes = [1, 32], strides = [1, 1]} : vector<1x128xf32> to vector<1x32xf32>
    %cst_94 = arith.constant 0.000000e+00 : f32
    %211 = vector.broadcast %cst_94 : f32 to vector<1x32xf32>
    %212 = arith.subf %211, %210 : vector<1x32xf32>
    %213 = math.exp %212 : vector<1x32xf32>
    %cst_95 = arith.constant 1.000000e+00 : f32
    %214 = vector.broadcast %cst_95 : f32 to vector<1x32xf32>
    %215 = arith.addf %214, %213 : vector<1x32xf32>
    %cst_96 = arith.constant 1.000000e+00 : f32
    %216 = vector.broadcast %cst_96 : f32 to vector<1x32xf32>
    %217 = arith.divf %216, %215 : vector<1x32xf32>
    %218 = arith.mulf %207, %184 : vector<1x32xf32>
    %219 = arith.mulf %199, %209 : vector<1x32xf32>
    %220 = arith.addf %218, %219 : vector<1x32xf32>
    %221 = math.tanh %220 : vector<1x32xf32>
    %222 = arith.mulf %217, %221 : vector<1x32xf32>
    %c5_97 = arith.constant 5 : index
    %c0_98 = arith.constant 0 : index
    %223 = vector.load %arg8[%c5_97, %c0_98] : memref<8x32xf32, #tpu.memory_space<vmem>>, vector<1x32xf32>
    tpu.vector_store %arg8[%c5_97, %c0_98], %222 {strides = array<i32>} : memref<8x32xf32, #tpu.memory_space<vmem>>, vector<1x32xf32>,
    %c6 = arith.constant 6 : index
    %c0_99 = arith.constant 0 : index
    %224 = vector.load %arg7[%c6, %c0_99] : memref<8x128xf32, #tpu.memory_space<vmem>>, vector<1x128xf32>
    %c0_100 = arith.constant 0 : index
    %c0_101 = arith.constant 0 : index
    %225 = vector.load %arg2[%c0_100, %c0_101] : memref<32x128xf32, #tpu.memory_space<vmem>>, vector<32x128xf32>
    %cst_102 = arith.constant dense<0.000000e+00> : vector<1x128xf32>
    %226 = tpu.matmul %222, %225, %cst_102 {dimension_numbers = #tpu.dot_dimension_numbers<[1], [0], [0], [1], [0, 0, 1, 1], [], []>} : vector<1x32xf32>, vector<32x128xf32>, vector<1x128xf32> -> vector<1x128xf32>
    %227 = arith.addf %224, %226 : vector<1x128xf32>
    %228 = vector.extract_strided_slice %227 {offsets = [0, 0], sizes = [1, 32], strides = [1, 1]} : vector<1x128xf32> to vector<1x32xf32>
    %cst_103 = arith.constant 0.000000e+00 : f32
    %229 = vector.broadcast %cst_103 : f32 to vector<1x32xf32>
    %230 = arith.subf %229, %228 : vector<1x32xf32>
    %231 = math.exp %230 : vector<1x32xf32>
    %cst_104 = arith.constant 1.000000e+00 : f32
    %232 = vector.broadcast %cst_104 : f32 to vector<1x32xf32>
    %233 = arith.addf %232, %231 : vector<1x32xf32>
    %cst_105 = arith.constant 1.000000e+00 : f32
    %234 = vector.broadcast %cst_105 : f32 to vector<1x32xf32>
    %235 = arith.divf %234, %233 : vector<1x32xf32>
    %236 = vector.extract_strided_slice %227 {offsets = [0, 32], sizes = [1, 32], strides = [1, 1]} : vector<1x128xf32> to vector<1x32xf32>
    %cst_106 = arith.constant 0.000000e+00 : f32
    %237 = vector.broadcast %cst_106 : f32 to vector<1x32xf32>
    %238 = arith.subf %237, %236 : vector<1x32xf32>
    %239 = math.exp %238 : vector<1x32xf32>
    %cst_107 = arith.constant 1.000000e+00 : f32
    %240 = vector.broadcast %cst_107 : f32 to vector<1x32xf32>
    %241 = arith.addf %240, %239 : vector<1x32xf32>
    %cst_108 = arith.constant 1.000000e+00 : f32
    %242 = vector.broadcast %cst_108 : f32 to vector<1x32xf32>
    %243 = arith.divf %242, %241 : vector<1x32xf32>
    %244 = vector.extract_strided_slice %227 {offsets = [0, 64], sizes = [1, 32], strides = [1, 1]} : vector<1x128xf32> to vector<1x32xf32>
    %245 = math.tanh %244 : vector<1x32xf32>
    %246 = vector.extract_strided_slice %227 {offsets = [0, 96], sizes = [1, 32], strides = [1, 1]} : vector<1x128xf32> to vector<1x32xf32>
    %cst_109 = arith.constant 0.000000e+00 : f32
    %247 = vector.broadcast %cst_109 : f32 to vector<1x32xf32>
    %248 = arith.subf %247, %246 : vector<1x32xf32>
    %249 = math.exp %248 : vector<1x32xf32>
    %cst_110 = arith.constant 1.000000e+00 : f32
    %250 = vector.broadcast %cst_110 : f32 to vector<1x32xf32>
    %251 = arith.addf %250, %249 : vector<1x32xf32>
    %cst_111 = arith.constant 1.000000e+00 : f32
    %252 = vector.broadcast %cst_111 : f32 to vector<1x32xf32>
    %253 = arith.divf %252, %251 : vector<1x32xf32>
    %254 = arith.mulf %243, %220 : vector<1x32xf32>
    %255 = arith.mulf %235, %245 : vector<1x32xf32>
    %256 = arith.addf %254, %255 : vector<1x32xf32>
    %257 = math.tanh %256 : vector<1x32xf32>
    %258 = arith.mulf %253, %257 : vector<1x32xf32>
    %c6_112 = arith.constant 6 : index
    %c0_113 = arith.constant 0 : index
    %259 = vector.load %arg8[%c6_112, %c0_113] : memref<8x32xf32, #tpu.memory_space<vmem>>, vector<1x32xf32>
    tpu.vector_store %arg8[%c6_112, %c0_113], %258 {strides = array<i32>} : memref<8x32xf32, #tpu.memory_space<vmem>>, vector<1x32xf32>,
    %c7 = arith.constant 7 : index
    %c0_114 = arith.constant 0 : index
    %260 = vector.load %arg7[%c7, %c0_114] : memref<8x128xf32, #tpu.memory_space<vmem>>, vector<1x128xf32>
    %c0_115 = arith.constant 0 : index
    %c0_116 = arith.constant 0 : index
    %261 = vector.load %arg2[%c0_115, %c0_116] : memref<32x128xf32, #tpu.memory_space<vmem>>, vector<32x128xf32>
    %cst_117 = arith.constant dense<0.000000e+00> : vector<1x128xf32>
    %262 = tpu.matmul %258, %261, %cst_117 {dimension_numbers = #tpu.dot_dimension_numbers<[1], [0], [0], [1], [0, 0, 1, 1], [], []>} : vector<1x32xf32>, vector<32x128xf32>, vector<1x128xf32> -> vector<1x128xf32>
    %263 = arith.addf %260, %262 : vector<1x128xf32>
    %264 = vector.extract_strided_slice %263 {offsets = [0, 0], sizes = [1, 32], strides = [1, 1]} : vector<1x128xf32> to vector<1x32xf32>
    %cst_118 = arith.constant 0.000000e+00 : f32
    %265 = vector.broadcast %cst_118 : f32 to vector<1x32xf32>
    %266 = arith.subf %265, %264 : vector<1x32xf32>
    %267 = math.exp %266 : vector<1x32xf32>
    %cst_119 = arith.constant 1.000000e+00 : f32
    %268 = vector.broadcast %cst_119 : f32 to vector<1x32xf32>
    %269 = arith.addf %268, %267 : vector<1x32xf32>
    %cst_120 = arith.constant 1.000000e+00 : f32
    %270 = vector.broadcast %cst_120 : f32 to vector<1x32xf32>
    %271 = arith.divf %270, %269 : vector<1x32xf32>
    %272 = vector.extract_strided_slice %263 {offsets = [0, 32], sizes = [1, 32], strides = [1, 1]} : vector<1x128xf32> to vector<1x32xf32>
    %cst_121 = arith.constant 0.000000e+00 : f32
    %273 = vector.broadcast %cst_121 : f32 to vector<1x32xf32>
    %274 = arith.subf %273, %272 : vector<1x32xf32>
    %275 = math.exp %274 : vector<1x32xf32>
    %cst_122 = arith.constant 1.000000e+00 : f32
    %276 = vector.broadcast %cst_122 : f32 to vector<1x32xf32>
    %277 = arith.addf %276, %275 : vector<1x32xf32>
    %cst_123 = arith.constant 1.000000e+00 : f32
    %278 = vector.broadcast %cst_123 : f32 to vector<1x32xf32>
    %279 = arith.divf %278, %277 : vector<1x32xf32>
    %280 = vector.extract_strided_slice %263 {offsets = [0, 64], sizes = [1, 32], strides = [1, 1]} : vector<1x128xf32> to vector<1x32xf32>
    %281 = math.tanh %280 : vector<1x32xf32>
    %282 = vector.extract_strided_slice %263 {offsets = [0, 96], sizes = [1, 32], strides = [1, 1]} : vector<1x128xf32> to vector<1x32xf32>
    %cst_124 = arith.constant 0.000000e+00 : f32
    %283 = vector.broadcast %cst_124 : f32 to vector<1x32xf32>
    %284 = arith.subf %283, %282 : vector<1x32xf32>
    %285 = math.exp %284 : vector<1x32xf32>
    %cst_125 = arith.constant 1.000000e+00 : f32
    %286 = vector.broadcast %cst_125 : f32 to vector<1x32xf32>
    %287 = arith.addf %286, %285 : vector<1x32xf32>
    %cst_126 = arith.constant 1.000000e+00 : f32
    %288 = vector.broadcast %cst_126 : f32 to vector<1x32xf32>
    %289 = arith.divf %288, %287 : vector<1x32xf32>
    %290 = arith.mulf %279, %256 : vector<1x32xf32>
    %291 = arith.mulf %271, %281 : vector<1x32xf32>
    %292 = arith.addf %290, %291 : vector<1x32xf32>
    %293 = math.tanh %292 : vector<1x32xf32>
    %294 = arith.mulf %289, %293 : vector<1x32xf32>
    %c7_127 = arith.constant 7 : index
    %c0_128 = arith.constant 0 : index
    %295 = vector.load %arg8[%c7_127, %c0_128] : memref<8x32xf32, #tpu.memory_space<vmem>>, vector<1x32xf32>
    tpu.vector_store %arg8[%c7_127, %c0_128], %294 {strides = array<i32>} : memref<8x32xf32, #tpu.memory_space<vmem>>, vector<1x32xf32>,
    %c0_129 = arith.constant 0 : index
    %c0_130 = arith.constant 0 : index
    %296 = vector.load %arg8[%c0_129, %c0_130] : memref<8x32xf32, #tpu.memory_space<vmem>>, vector<8x32xf32>
    %c0_131 = arith.constant 0 : index
    %c0_132 = arith.constant 0 : index
    %297 = vector.load %arg4[%c0_131, %c0_132] : memref<32x128xf32, #tpu.memory_space<vmem>>, vector<32x128xf32>
    %cst_133 = arith.constant dense<0.000000e+00> : vector<8x128xf32>
    %298 = tpu.matmul %296, %297, %cst_133 {dimension_numbers = #tpu.dot_dimension_numbers<[1], [0], [0], [1], [0, 0, 1, 1], [], []>} : vector<8x32xf32>, vector<32x128xf32>, vector<8x128xf32> -> vector<8x128xf32>
    %c0_134 = arith.constant 0 : index
    %c0_135 = arith.constant 0 : index
    %299 = vector.load %arg5[%c0_134, %c0_135] : memref<1x128xf32, #tpu.memory_space<vmem>>, vector<1x128xf32>
    %300 = vector.broadcast %299 : vector<1x128xf32> to vector<8x128xf32>
    %301 = arith.addf %298, %300 : vector<8x128xf32>
    %c0_136 = arith.constant 0 : index
    %c0_137 = arith.constant 0 : index
    %302 = vector.load %arg6[%c0_136, %c0_137] : memref<8x128xf32, #tpu.memory_space<vmem>>, vector<8x128xf32>
    tpu.vector_store %arg6[%c0_136, %c0_137], %301 {strides = array<i32>} : memref<8x128xf32, #tpu.memory_space<vmem>>, vector<8x128xf32>,
    return
  }
}

</mosaic_0001>

<llo_original>
// kernel: tpu_custom_call.1
$region0: #{tpu_custom_call.1}
  #allocation0 [shape = 'u32[]', space=smem, size = 0x4, offset = 0x4, fixed_abs, tag = 'smem constant byte address 0x4 - core index']
  #allocation1 [shape = 'u32[144,128]{1,0:T(1,128)}', space=vmem, size = 0x12000, scoped, tag = 'internal scratch']
  #allocation2 [shape = 'f32[8,128]{1,0:T(8,128)}', space=vmem, size = 0x1000, scoped, tag = 'scratch operand']
  #allocation3 [shape = 'f32[8,32]{1,0:T(8,128)}', space=vmem, size = 0x1000, scoped, tag = 'scratch operand']
  %s0 = inlined_call_operand.hbm [shape: f32[8,16], index: 0, kind: input, shape index: {}]
  %s1 = inlined_call_operand.hbm [shape: f32[16,128], index: 1, kind: input, shape index: {}]
  %s2 = inlined_call_operand.hbm [shape: f32[32,128], index: 2, kind: input, shape index: {}]
  %s3 = inlined_call_operand.vmem [shape: f32[1,128], index: 3, kind: input, shape index: {}]
  %s4 = inlined_call_operand.hbm [shape: f32[32,128], index: 4, kind: input, shape index: {}]
  %s5 = inlined_call_operand.vmem [shape: f32[1,128], index: 5, kind: input, shape index: {}]
  %s6 = inlined_call_operand.hbm [shape: f32[8,128], index: 6, kind: output, shape index: {}]
  %s7 = sld [smem:[#allocation0]]
  $region50: #{tpu_custom_call.1} parent=0
    _
  %s9 = ssub.s32 1, %s7
  %s10 = scalar_select 0, %s9, %s7
  $region1: #{tpu_custom_call.1} parent=0
    #allocation4 [shape = 'u8[4096]{0}', space=vmem, size = 0x1000, scoped, tag = 'input window, operand 0, single buffered']
    #allocation5 [shape = 's32[1]{0}', space=sflag, size = 0x4, scoped, tag = 'scoped memory for tpu_custom_call.1']
    #allocation6 [shape = 's32[1]{0}', space=sflag, size = 0x4, scoped, tag = 'scoped memory for tpu_custom_call.1']
    #allocation7 [shape = 'u8[8192]{0}', space=vmem, size = 0x2000, scoped, tag = 'input window, operand 1, single buffered']
    #allocation8 [shape = 's32[1]{0}', space=sflag, size = 0x4, scoped, tag = 'scoped memory for tpu_custom_call.1']
    #allocation9 [shape = 'u8[16384]{0}', space=vmem, size = 0x4000, scoped, tag = 'input window, operand 2, single buffered']
    #allocation10 [shape = 'u8[16384]{0}', space=vmem, size = 0x4000, scoped, tag = 'input window, operand 4, single buffered']
    #allocation11 [shape = 's32[1]{0}', space=sflag, size = 0x4, scoped, tag = 'scoped memory for tpu_custom_call.1']
    #allocation12 [shape = 'u8[4096]{0}', space=vmem, size = 0x1000, scoped, tag = 'output window, operand 0, single buffered']
    %11 = vsyncpa [#allocation5], 0
    %12 = vsyncpa [#allocation8], 0
    %13 = vsyncpa [#allocation11], 0
    %14 = vsyncpa [#allocation6], 0
    // Predicated region
    $region2: #{tpu_custom_call.1} parent=1 // pred_check
      _
    $region3: #{tpu_custom_call.1} parent=1 // pred_check_branch
      %16 = sbr.rel (0) target = $region5
    $region4: #{tpu_custom_call.1} parent=1 // pred_region
      %s18 = ssub.s32 128, 128
      %19 = vsyncadd [#allocation5], %s18
      %s21 = sshll.u32 [#allocation4], 4
      %s22 = int_to_ptr.vmem [resolvable:$true] %s21
      %24 = dma.hbm_to_vmem [thread:$0]  %s0, 128, %s22, [#allocation5]
    $region5: #{tpu_custom_call.1} parent=1 // pred_fallthru
      _
    // Predicated region
    $region6: #{tpu_custom_call.1} parent=1 // pred_check
      _
    $region7: #{tpu_custom_call.1} parent=1 // pred_check_branch
      %26 = sbr.rel (0) target = $region9
    $region8: #{tpu_custom_call.1} parent=1 // pred_region
      %s28 = ssub.s32 256, 256
      %29 = vsyncadd [#allocation8], %s28
      %s30 = sshll.u32 [#allocation7], 4
      %s31 = int_to_ptr.vmem [resolvable:$true] %s30
      %36 = dma.hbm_to_vmem [thread:$0]  %s1, 256, %s31, [#allocation8], 128, 128, 8
    $region9: #{tpu_custom_call.1} parent=1 // pred_fallthru
      _
    // Predicated region
    $region10: #{tpu_custom_call.1} parent=1 // pred_check
      _
    $region11: #{tpu_custom_call.1} parent=1 // pred_check_branch
      %38 = sbr.rel (0) target = $region13
    $region12: #{tpu_custom_call.1} parent=1 // pred_region
      %s40 = ssub.s32 512, 512
      %41 = vsyncadd [#allocation8], %s40
      %s42 = sshll.u32 [#allocation9], 4
      %s43 = int_to_ptr.vmem [resolvable:$true] %s42
      %48 = dma.hbm_to_vmem [thread:$0]  %s2, 512, %s43, [#allocation8], 128, 128, 8
    $region13: #{tpu_custom_call.1} parent=1 // pred_fallthru
      _
    // Predicated region
    $region14: #{tpu_custom_call.1} parent=1 // pred_check
      _
    $region15: #{tpu_custom_call.1} parent=1 // pred_check_branch
      %50 = sbr.rel (0) target = $region17
    $region16: #{tpu_custom_call.1} parent=1 // pred_region
      _
    $region17: #{tpu_custom_call.1} parent=1 // pred_fallthru
      _
    // Predicated region
    $region18: #{tpu_custom_call.1} parent=1 // pred_check
      _
    $region19: #{tpu_custom_call.1} parent=1 // pred_check_branch
      %52 = sbr.rel (0) target = $region21
    $region20: #{tpu_custom_call.1} parent=1 // pred_region
      %s54 = ssub.s32 512, 512
      %55 = vsyncadd [#allocation11], %s54
      %s56 = sshll.u32 [#allocation10], 4
      %s57 = int_to_ptr.vmem [resolvable:$true] %s56
      %62 = dma.hbm_to_vmem [thread:$0]  %s4, 512, %s57, [#allocation11], 128, 128, 8
    $region21: #{tpu_custom_call.1} parent=1 // pred_fallthru
      _
    // Predicated region
    $region22: #{tpu_custom_call.1} parent=1 // pred_check
      _
    $region23: #{tpu_custom_call.1} parent=1 // pred_check_branch
      %64 = sbr.rel (0) target = $region25
    $region24: #{tpu_custom_call.1} parent=1 // pred_region
      _
    $region25: #{tpu_custom_call.1} parent=1 // pred_fallthru
      _
    // Predicated region
    $region26: #{tpu_custom_call.1} parent=1 // pred_check
      _
    $region27: #{tpu_custom_call.1} parent=1 // pred_check_branch
      %66 = sbr.rel (0) target = $region29
    $region28: #{tpu_custom_call.1} parent=1 // pred_region
      %67 = dma.done [#allocation5], 128
    $region29: #{tpu_custom_call.1} parent=1 // pred_fallthru
      _
    // Predicated region
    $region30: #{tpu_custom_call.1} parent=1 // pred_check
      _
    $region31: #{tpu_custom_call.1} parent=1 // pred_check_branch
      %69 = sbr.rel (0) target = $region33
    $region32: #{tpu_custom_call.1} parent=1 // pred_region
      %70 = dma.done [#allocation8], 256
    $region33: #{tpu_custom_call.1} parent=1 // pred_fallthru
      _
    // Predicated region
    $region34: #{tpu_custom_call.1} parent=1 // pred_check
      _
    $region35: #{tpu_custom_call.1} parent=1 // pred_check_branch
      %72 = sbr.rel (0) target = $region37
    $region36: #{tpu_custom_call.1} parent=1 // pred_region
      %73 = dma.done [#allocation8], 512
    $region37: #{tpu_custom_call.1} parent=1 // pred_fallthru
      _
    // Predicated region
    $region38: #{tpu_custom_call.1} parent=1 // pred_check
      _
    $region39: #{tpu_custom_call.1} parent=1 // pred_check_branch
      %75 = sbr.rel (0) target = $region41
    $region40: #{tpu_custom_call.1} parent=1 // pred_region
      %76 = dma.done [#allocation11], 512
    $region41: #{tpu_custom_call.1} parent=1 // pred_fallthru
      _
    %v77 = vld [vmem:[#allocation4] sm:$0xff]
    %v78 = vld [vmem:[#allocation7] sm:$0xff]
    %v79 = vld [vmem:[#allocation7 + $0x8] sm:$0xff]
    %v80 = vld [vmem:[%s3] sm:$0x1]
    %v82 = vlaneseq
    %v83 = vshrl.u32 %v82, 7
    %v84 = vsub.s32 0, %v83
    %v85 = vrot.slane %v80, %v84
    %vm87 = vcmask 130048
    %v89 = vsel %vm87, %v77, 0
    %91 = vmatprep.subr.mxu0 0.0
    %92 = vmatpush1.msra.mxu0 %v78
    %93 = vmatprep.subr.mxu0 0.0
    %94 = vmatpush1.msra.mxu0 %v79
    %95 = vmatprep.subr.mxu0 0.0
    %96 = vmatpush1.msra.mxu0 0.0
    %97 = vmatprep.subr.mxu0 0.0
    %98 = vmatpush1.msra.mxu0 0.0
    %99 = vmatprep.subr.mxu0 0.0
    %100 = vmatpush1.msra.mxu0 0.0
    %101 = vmatprep.subr.mxu0 0.0
    %102 = vmatpush1.msra.mxu0 0.0
    %103 = vmatprep.subr.mxu0 0.0
    %104 = vmatpush1.msra.mxu0 0.0
    %105 = vmatprep.subr.mxu0 0.0
    %106 = vmatpush1.msra.mxu0 0.0
    %107 = vmatprep.subr.mxu0 0.0
    %108 = vmatpush1.msra.mxu0 0.0
    %109 = vmatprep.subr.mxu0 0.0
    %110 = vmatpush1.msra.mxu0 0.0
    %111 = vmatprep.subr.mxu0 0.0
    %112 = vmatpush1.msra.mxu0 0.0
    %113 = vmatprep.subr.mxu0 0.0
    %114 = vmatpush1.msra.mxu0 0.0
    %115 = vmatprep.subr.mxu0 0.0
    %116 = vmatpush1.msra.mxu0 0.0
    %117 = vmatprep.subr.mxu0 0.0
    %118 = vmatpush1.msra.mxu0 0.0
    %119 = vmatprep.subr.mxu0 0.0
    %120 = vmatpush1.msra.mxu0 0.0
    %121 = vmatprep.subr.mxu0 0.0
    %122 = vmatpush1.msra.mxu0 0.0
    %123 = vmatprep.subr.mxu0 0.0
    %124 = vmatpush1.msra.mxu0 0.0
    %125 = vmatprep.subr.mxu0 0.0
    %126 = vmatpush1.msra.mxu0 0.0
    %127 = vmatprep.subr.mxu0 0.0
    %128 = vmatpush1.msra.mxu0 0.0
    %129 = vmatprep.subr.mxu0 0.0
    %130 = vmatpush1.msra.mxu0 0.0
    %131 = vmatprep.subr.mxu0 0.0
    %132 = vmatpush1.msra.mxu0 0.0
    %133 = vmatprep.subr.mxu0 0.0
    %134 = vmatpush1.msra.mxu0 0.0
    %135 = vmatprep.subr.mxu0 0.0
    %136 = vmatpush1.msra.mxu0 0.0
    %137 = vmatprep.subr.mxu0 0.0
    %138 = vmatpush1.msra.mxu0 0.0
    %139 = vmatprep.subr.mxu0 0.0
    %140 = vmatpush1.msra.mxu0 0.0
    %141 = vmatprep.subr.mxu0 0.0
    %142 = vmatpush1.msra.mxu0 0.0
    %143 = vmatprep.subr.mxu0 0.0
    %144 = vmatpush1.msra.mxu0 0.0
    %145 = vmatprep.subr.mxu0 0.0
    %146 = vmatpush1.msra.mxu0 0.0
    %147 = vmatprep.subr.mxu0 0.0
    %148 = vmatpush1.msra.mxu0 0.0
    %149 = vmatprep.subr.mxu0 0.0
    %150 = vmatpush1.msra.mxu0 0.0
    %151 = vmatprep.subr.mxu0 0.0
    %152 = vmatpush1.msra.mxu0 0.0
    %153 = vmatprep.subr.mxu0 0.0
    %154 = vmatpush1.msra.mxu0 0.0
    %155 = vmatprep.mubr.f32.mxu0 0.0
    %156 = vmatmul.mubr.f32.gmra.mrb[0].mxu0 %v89
    %v157 = vpop.f32.mrb[0].mxu0
    %v158 = vadd.f32 %v85, %v157
    %v159 = vpop.f32.mrb[0].mxu0
    %160 = vdwg.mxu0
    %161 = vst [vmem:[#allocation2] sm:$0xff] %v158
    %v162 = vld [vmem:[#allocation2] sm:$0x1]
    %v163 = vld [vmem:[#allocation9] sm:$0xff]
    %v164 = vld [vmem:[#allocation9 + $0x8] sm:$0xff]
    %v165 = vld [vmem:[#allocation9 + $0x10] sm:$0xff]
    %v166 = vld [vmem:[#allocation9 + $0x18] sm:$0xff]
    %vm167 = vcmask 261120
    %v169 = vsel %vm167, 0.0, 0
    %171 = vmatprep.subr.mxu0 0.0
    %172 = vmatpush1.msra.mxu0 %v163
    %173 = vmatprep.subr.mxu0 0.0
    %174 = vmatpush1.msra.mxu0 %v164
    %175 = vmatprep.subr.mxu0 0.0
    %176 = vmatpush1.msra.mxu0 %v165
    %177 = vmatprep.subr.mxu0 0.0
    %178 = vmatpush1.msra.mxu0 %v166
    %179 = vmatprep.subr.mxu0 0.0
    %180 = vmatpush1.msra.mxu0 0.0
    %181 = vmatprep.subr.mxu0 0.0
    %182 = vmatpush1.msra.mxu0 0.0
    %183 = vmatprep.subr.mxu0 0.0
    %184 = vmatpush1.msra.mxu0 0.0
    %185 = vmatprep.subr.mxu0 0.0
    %186 = vmatpush1.msra.mxu0 0.0
    %187 = vmatprep.subr.mxu0 0.0
    %188 = vmatpush1.msra.mxu0 0.0
    %189 = vmatprep.subr.mxu0 0.0
    %190 = vmatpush1.msra.mxu0 0.0
    %191 = vmatprep.subr.mxu0 0.0
    %192 = vmatpush1.msra.mxu0 0.0
    %193 = vmatprep.subr.mxu0 0.0
    %194 = vmatpush1.msra.mxu0 0.0
    %195 = vmatprep.subr.mxu0 0.0
    %196 = vmatpush1.msra.mxu0 0.0
    %197 = vmatprep.subr.mxu0 0.0
    %198 = vmatpush1.msra.mxu0 0.0
    %199 = vmatprep.subr.mxu0 0.0
    %200 = vmatpush1.msra.mxu0 0.0
    %201 = vmatprep.subr.mxu0 0.0
    %202 = vmatpush1.msra.mxu0 0.0
    %203 = vmatprep.subr.mxu0 0.0
    %204 = vmatpush1.msra.mxu0 0.0
    %205 = vmatprep.subr.mxu0 0.0
    %206 = vmatpush1.msra.mxu0 0.0
    %207 = vmatprep.subr.mxu0 0.0
    %208 = vmatpush1.msra.mxu0 0.0
    %209 = vmatprep.subr.mxu0 0.0
    %210 = vmatpush1.msra.mxu0 0.0
    %211 = vmatprep.subr.mxu0 0.0
    %212 = vmatpush1.msra.mxu0 0.0
    %213 = vmatprep.subr.mxu0 0.0
    %214 = vmatpush1.msra.mxu0 0.0
    %215 = vmatprep.subr.mxu0 0.0
    %216 = vmatpush1.msra.mxu0 0.0
    %217 = vmatprep.subr.mxu0 0.0
    %218 = vmatpush1.msra.mxu0 0.0
    %219 = vmatprep.subr.mxu0 0.0
    %220 = vmatpush1.msra.mxu0 0.0
    %221 = vmatprep.subr.mxu0 0.0
    %222 = vmatpush1.msra.mxu0 0.0
    %223 = vmatprep.subr.mxu0 0.0
    %224 = vmatpush1.msra.mxu0 0.0
    %225 = vmatprep.subr.mxu0 0.0
    %226 = vmatpush1.msra.mxu0 0.0
    %227 = vmatprep.subr.mxu0 0.0
    %228 = vmatpush1.msra.mxu0 0.0
    %229 = vmatprep.subr.mxu0 0.0
    %230 = vmatpush1.msra.mxu0 0.0
    %231 = vmatprep.subr.mxu0 0.0
    %232 = vmatpush1.msra.mxu0 0.0
    %233 = vmatprep.subr.mxu0 0.0
    %234 = vmatpush1.msra.mxu0 0.0
    %235 = vmatprep.mubr.f32.mxu0 0.0
    %236 = vmatmul.mubr.f32.gmra.mrb[0].mxu0 %v169
    %v237 = vpop.f32.mrb[0].mxu0
    %v238 = vadd.f32 0.0, %v237
    %v239 = vpop.f32.mrb[0].mxu0
    %240 = vdwg.mxu0
    %v241 = vadd.f32 %v162, %v238
    %v242 = vsub.f32 0.0, %v241
    %v243 = vmul.f32 %v242, 1.442695
    %v244 = vpow.pop %v243
    %v245 = vadd.f32 %v244, 1.0
    %v246 = vrcp.pop %v245
    %v247 = vmul.f32 1.0, %v246
    %v248 = vtanh.pop %v241
    %v249 = vmul.f32 %v247, 0.0
    %251 = vrot.lane.b32.xlu0 %v248, 64
    %v252 = vpop.permute.xlu0 %251
    %v254 = vmul.f32 %v247, %v252
    %256 = vrot.lane.b32.xlu0 %v254, 32
    %v257 = vpop.permute.xlu0 %256
    %v259 = vadd.f32 %v249, %v257
    %v260 = vtanh.pop %v259
    %262 = vrot.lane.b32.xlu0 %v260, 64
    %v263 = vpop.permute.xlu0 %262
    %v265 = vmul.f32 %v247, %v263
    %267 = vrot.lane.b32.xlu0 %v265, 32
    %v268 = vpop.permute.xlu0 %267
    %vm270 = vcmask 253952
    %271 = vst.msk [vmem:[#allocation3] sm:$0x1] %vm270, %v268
    %v272 = vld [vmem:[#allocation2 + $0x1] sm:$0x1]
    %v273 = vld [vmem:[#allocation9] sm:$0xff]
    %v274 = vld [vmem:[#allocation9 + $0x8] sm:$0xff]
    %v275 = vld [vmem:[#allocation9 + $0x10] sm:$0xff]
    %v276 = vld [vmem:[#allocation9 + $0x18] sm:$0xff]
    %v277 = vsel %vm167, %v268, 0
    %279 = vmatprep.subr.mxu0 0.0
    %280 = vmatpush1.msra.mxu0 %v273
    %281 = vmatprep.subr.mxu0 0.0
    %282 = vmatpush1.msra.mxu0 %v274
    %283 = vmatprep.subr.mxu0 0.0
    %284 = vmatpush1.msra.mxu0 %v275
    %285 = vmatprep.subr.mxu0 0.0
    %286 = vmatpush1.msra.mxu0 %v276
    %287 = vmatprep.subr.mxu0 0.0
    %288 = vmatpush1.msra.mxu0 0.0
    %289 = vmatprep.subr.mxu0 0.0
    %290 = vmatpush1.msra.mxu0 0.0
    %291 = vmatprep.subr.mxu0 0.0
    %292 = vmatpush1.msra.mxu0 0.0
    %293 = vmatprep.subr.mxu0 0.0
    %294 = vmatpush1.msra.mxu0 0.0
    %295 = vmatprep.subr.mxu0 0.0
    %296 = vmatpush1.msra.mxu0 0.0
    %297 = vmatprep.subr.mxu0 0.0
    %298 = vmatpush1.msra.mxu0 0.0
    %299 = vmatprep.subr.mxu0 0.0
    %300 = vmatpush1.msra.mxu0 0.0
    %301 = vmatprep.subr.mxu0 0.0
    %302 = vmatpush1.msra.mxu0 0.0
    %303 = vmatprep.subr.mxu0 0.0
    %304 = vmatpush1.msra.mxu0 0.0
    %305 = vmatprep.subr.mxu0 0.0
    %306 = vmatpush1.msra.mxu0 0.0
    %307 = vmatprep.subr.mxu0 0.0
    %308 = vmatpush1.msra.mxu0 0.0
    %309 = vmatprep.subr.mxu0 0.0
    %310 = vmatpush1.msra.mxu0 0.0
    %311 = vmatprep.subr.mxu0 0.0
    %312 = vmatpush1.msra.mxu0 0.0
    %313 = vmatprep.subr.mxu0 0.0
    %314 = vmatpush1.msra.mxu0 0.0
    %315 = vmatprep.subr.mxu0 0.0
    %316 = vmatpush1.msra.mxu0 0.0
    %317 = vmatprep.subr.mxu0 0.0
    %318 = vmatpush1.msra.mxu0 0.0
    %319 = vmatprep.subr.mxu0 0.0
    %320 = vmatpush1.msra.mxu0 0.0
    %321 = vmatprep.subr.mxu0 0.0
    %322 = vmatpush1.msra.mxu0 0.0
    %323 = vmatprep.subr.mxu0 0.0
    %324 = vmatpush1.msra.mxu0 0.0
    %325 = vmatprep.subr.mxu0 0.0
    %326 = vmatpush1.msra.mxu0 0.0
    %327 = vmatprep.subr.mxu0 0.0
    %328 = vmatpush1.msra.mxu0 0.0
    %329 = vmatprep.subr.mxu0 0.0
    %330 = vmatpush1.msra.mxu0 0.0
    %331 = vmatprep.subr.mxu0 0.0
    %332 = vmatpush1.msra.mxu0 0.0
    %333 = vmatprep.subr.mxu0 0.0
    %334 = vmatpush1.msra.mxu0 0.0
    %335 = vmatprep.subr.mxu0 0.0
    %336 = vmatpush1.msra.mxu0 0.0
    %337 = vmatprep.subr.mxu0 0.0
    %338 = vmatpush1.msra.mxu0 0.0
    %339 = vmatprep.subr.mxu0 0.0
    %340 = vmatpush1.msra.mxu0 0.0
    %341 = vmatprep.subr.mxu0 0.0
    %342 = vmatpush1.msra.mxu0 0.0
    %343 = vmatprep.mubr.f32.mxu0 0.0
    %344 = vmatmul.mubr.f32.gmra.mrb[0].mxu0 %v277
    %v345 = vpop.f32.mrb[0].mxu0
    %v346 = vadd.f32 0.0, %v345
    %v347 = vpop.f32.mrb[0].mxu0
    %348 = vdwg.mxu0
    %v349 = vadd.f32 %v272, %v346
    %v350 = vsub.f32 0.0, %v349
    %v351 = vmul.f32 %v350, 1.442695
    %v352 = vpow.pop %v351
    %v353 = vadd.f32 %v352, 1.0
    %v354 = vrcp.pop %v353
    %v355 = vmul.f32 1.0, %v354
    %v356 = vtanh.pop %v349
    %v357 = vmul.f32 %v355, %v259
    %359 = vrot.lane.b32.xlu0 %v356, 64
    %v360 = vpop.permute.xlu0 %359
    %v362 = vmul.f32 %v355, %v360
    %364 = vrot.lane.b32.xlu0 %v362, 32
    %v365 = vpop.permute.xlu0 %364
    %v367 = vadd.f32 %v357, %v365
    %v368 = vtanh.pop %v367
    %370 = vrot.lane.b32.xlu0 %v368, 64
    %v371 = vpop.permute.xlu0 %370
    %v373 = vmul.f32 %v355, %v371
    %375 = vrot.lane.b32.xlu0 %v373, 32
    %v376 = vpop.permute.xlu0 %375
    %378 = vst.msk [vmem:[#allocation3 + $0x1] sm:$0x1] %vm270, %v376
    %v379 = vld [vmem:[#allocation2 + $0x2] sm:$0x1]
    %v380 = vld [vmem:[#allocation9] sm:$0xff]
    %v381 = vld [vmem:[#allocation9 + $0x8] sm:$0xff]
    %v382 = vld [vmem:[#allocation9 + $0x10] sm:$0xff]
    %v383 = vld [vmem:[#allocation9 + $0x18] sm:$0xff]
    %v384 = vsel %vm167, %v376, 0
    %386 = vmatprep.subr.mxu0 0.0
    %387 = vmatpush1.msra.mxu0 %v380
    %388 = vmatprep.subr.mxu0 0.0
    %389 = vmatpush1.msra.mxu0 %v381
    %390 = vmatprep.subr.mxu0 0.0
    %391 = vmatpush1.msra.mxu0 %v382
    %392 = vmatprep.subr.mxu0 0.0
    %393 = vmatpush1.msra.mxu0 %v383
    %394 = vmatprep.subr.mxu0 0.0
    %395 = vmatpush1.msra.mxu0 0.0
    %396 = vmatprep.subr.mxu0 0.0
    %397 = vmatpush1.msra.mxu0 0.0
    %398 = vmatprep.subr.mxu0 0.0
    %399 = vmatpush1.msra.mxu0 0.0
    %400 = vmatprep.subr.mxu0 0.0
    %401 = vmatpush1.msra.mxu0 0.0
    %402 = vmatprep.subr.mxu0 0.0
    %403 = vmatpush1.msra.mxu0 0.0
    %404 = vmatprep.subr.mxu0 0.0
    %405 = vmatpush1.msra.mxu0 0.0
    %406 = vmatprep.subr.mxu0 0.0
    %407 = vmatpush1.msra.mxu0 0.0
    %408 = vmatprep.subr.mxu0 0.0
    %409 = vmatpush1.msra.mxu0 0.0
    %410 = vmatprep.subr.mxu0 0.0
    %411 = vmatpush1.msra.mxu0 0.0
    %412 = vmatprep.subr.mxu0 0.0
    %413 = vmatpush1.msra.mxu0 0.0
    %414 = vmatprep.subr.mxu0 0.0
    %415 = vmatpush1.msra.mxu0 0.0
    %416 = vmatprep.subr.mxu0 0.0
    %417 = vmatpush1.msra.mxu0 0.0
    %418 = vmatprep.subr.mxu0 0.0
    %419 = vmatpush1.msra.mxu0 0.0
    %420 = vmatprep.subr.mxu0 0.0
    %421 = vmatpush1.msra.mxu0 0.0
    %422 = vmatprep.subr.mxu0 0.0
    %423 = vmatpush1.msra.mxu0 0.0
    %424 = vmatprep.subr.mxu0 0.0
    %425 = vmatpush1.msra.mxu0 0.0
    %426 = vmatprep.subr.mxu0 0.0
    %427 = vmatpush1.msra.mxu0 0.0
    %428 = vmatprep.subr.mxu0 0.0
    %429 = vmatpush1.msra.mxu0 0.0
    %430 = vmatprep.subr.mxu0 0.0
    %431 = vmatpush1.msra.mxu0 0.0
    %432 = vmatprep.subr.mxu0 0.0
    %433 = vmatpush1.msra.mxu0 0.0
    %434 = vmatprep.subr.mxu0 0.0
    %435 = vmatpush1.msra.mxu0 0.0
    %436 = vmatprep.subr.mxu0 0.0
    %437 = vmatpush1.msra.mxu0 0.0
    %438 = vmatprep.subr.mxu0 0.0
    %439 = vmatpush1.msra.mxu0 0.0
    %440 = vmatprep.subr.mxu0 0.0
    %441 = vmatpush1.msra.mxu0 0.0
    %442 = vmatprep.subr.mxu0 0.0
    %443 = vmatpush1.msra.mxu0 0.0
    %444 = vmatprep.subr.mxu0 0.0
    %445 = vmatpush1.msra.mxu0 0.0
    %446 = vmatprep.subr.mxu0 0.0
    %447 = vmatpush1.msra.mxu0 0.0
    %448 = vmatprep.subr.mxu0 0.0
    %449 = vmatpush1.msra.mxu0 0.0
    %450 = vmatprep.mubr.f32.mxu0 0.0
    %451 = vmatmul.mubr.f32.gmra.mrb[0].mxu0 %v384
    %v452 = vpop.f32.mrb[0].mxu0
    %v453 = vadd.f32 0.0, %v452
    %v454 = vpop.f32.mrb[0].mxu0
    %455 = vdwg.mxu0
    %v456 = vadd.f32 %v379, %v453
    %v457 = vsub.f32 0.0, %v456
    %v458 = vmul.f32 %v457, 1.442695
    %v459 = vpow.pop %v458
    %v460 = vadd.f32 %v459, 1.0
    %v461 = vrcp.pop %v460
    %v462 = vmul.f32 1.0, %v461
    %v463 = vtanh.pop %v456
    %v464 = vmul.f32 %v462, %v367
    %466 = vrot.lane.b32.xlu0 %v463, 64
    %v467 = vpop.permute.xlu0 %466
    %v469 = vmul.f32 %v462, %v467
    %471 = vrot.lane.b32.xlu0 %v469, 32
    %v472 = vpop.permute.xlu0 %471
    %v474 = vadd.f32 %v464, %v472
    %v475 = vtanh.pop %v474
    %477 = vrot.lane.b32.xlu0 %v475, 64
    %v478 = vpop.permute.xlu0 %477
    %v480 = vmul.f32 %v462, %v478
    %482 = vrot.lane.b32.xlu0 %v480, 32
    %v483 = vpop.permute.xlu0 %482
    %485 = vst.msk [vmem:[#allocation3 + $0x2] sm:$0x1] %vm270, %v483
    %v486 = vld [vmem:[#allocation2 + $0x3] sm:$0x1]
    %v487 = vld [vmem:[#allocation9] sm:$0xff]
    %v488 = vld [vmem:[#allocation9 + $0x8] sm:$0xff]
    %v489 = vld [vmem:[#allocation9 + $0x10] sm:$0xff]
    %v490 = vld [vmem:[#allocation9 + $0x18] sm:$0xff]
    %v491 = vsel %vm167, %v483, 0
    %493 = vmatprep.subr.mxu0 0.0
    %494 = vmatpush1.msra.mxu0 %v487
    %495 = vmatprep.subr.mxu0 0.0
    %496 = vmatpush1.msra.mxu0 %v488
    %497 = vmatprep.subr.mxu0 0.0
    %498 = vmatpush1.msra.mxu0 %v489
    %499 = vmatprep.subr.mxu0 0.0
    %500 = vmatpush1.msra.mxu0 %v490
    %501 = vmatprep.subr.mxu0 0.0
    %502 = vmatpush1.msra.mxu0 0.0
    %503 = vmatprep.subr.mxu0 0.0
    %504 = vmatpush1.msra.mxu0 0.0
    %505 = vmatprep.subr.mxu0 0.0
    %506 = vmatpush1.msra.mxu0 0.0
    %507 = vmatprep.subr.mxu0 0.0
    %508 = vmatpush1.msra.mxu0 0.0
    %509 = vmatprep.subr.mxu0 0.0
    %510 = vmatpush1.msra.mxu0 0.0
    %511 = vmatprep.subr.mxu0 0.0
    %512 = vmatpush1.msra.mxu0 0.0
    %513 = vmatprep.subr.mxu0 0.0
    %514 = vmatpush1.msra.mxu0 0.0
    %515 = vmatprep.subr.mxu0 0.0
    %516 = vmatpush1.msra.mxu0 0.0
    %517 = vmatprep.subr.mxu0 0.0
    %518 = vmatpush1.msra.mxu0 0.0
    %519 = vmatprep.subr.mxu0 0.0
    %520 = vmatpush1.msra.mxu0 0.0
    %521 = vmatprep.subr.mxu0 0.0
    %522 = vmatpush1.msra.mxu0 0.0
    %523 = vmatprep.subr.mxu0 0.0
    %524 = vmatpush1.msra.mxu0 0.0
    %525 = vmatprep.subr.mxu0 0.0
    %526 = vmatpush1.msra.mxu0 0.0
    %527 = vmatprep.subr.mxu0 0.0
    %528 = vmatpush1.msra.mxu0 0.0
    %529 = vmatprep.subr.mxu0 0.0
    %530 = vmatpush1.msra.mxu0 0.0
    %531 = vmatprep.subr.mxu0 0.0
    %532 = vmatpush1.msra.mxu0 0.0
    %533 = vmatprep.subr.mxu0 0.0
    %534 = vmatpush1.msra.mxu0 0.0
    %535 = vmatprep.subr.mxu0 0.0
    %536 = vmatpush1.msra.mxu0 0.0
    %537 = vmatprep.subr.mxu0 0.0
    %538 = vmatpush1.msra.mxu0 0.0
    %539 = vmatprep.subr.mxu0 0.0
    %540 = vmatpush1.msra.mxu0 0.0
    %541 = vmatprep.subr.mxu0 0.0
    %542 = vmatpush1.msra.mxu0 0.0
    %543 = vmatprep.subr.mxu0 0.0
    %544 = vmatpush1.msra.mxu0 0.0
    %545 = vmatprep.subr.mxu0 0.0
    %546 = vmatpush1.msra.mxu0 0.0
    %547 = vmatprep.subr.mxu0 0.0
    %548 = vmatpush1.msra.mxu0 0.0
    %549 = vmatprep.subr.mxu0 0.0
    %550 = vmatpush1.msra.mxu0 0.0
    %551 = vmatprep.subr.mxu0 0.0
    %552 = vmatpush1.msra.mxu0 0.0
    %553 = vmatprep.subr.mxu0 0.0
    %554 = vmatpush1.msra.mxu0 0.0
    %555 = vmatprep.subr.mxu0 0.0
    %556 = vmatpush1.msra.mxu0 0.0
    %557 = vmatprep.mubr.f32.mxu0 0.0
    %558 = vmatmul.mubr.f32.gmra.mrb[0].mxu0 %v491
    %v559 = vpop.f32.mrb[0].mxu0
    %v560 = vadd.f32 0.0, %v559
    %v561 = vpop.f32.mrb[0].mxu0
    %562 = vdwg.mxu0
    %v563 = vadd.f32 %v486, %v560
    %v564 = vsub.f32 0.0, %v563
    %v565 = vmul.f32 %v564, 1.442695
    %v566 = vpow.pop %v565
    %v567 = vadd.f32 %v566, 1.0
    %v568 = vrcp.pop %v567
    %v569 = vmul.f32 1.0, %v568
    %v570 = vtanh.pop %v563
    %v571 = vmul.f32 %v569, %v474
    %573 = vrot.lane.b32.xlu0 %v570, 64
    %v574 = vpop.permute.xlu0 %573
    %v576 = vmul.f32 %v569, %v574
    %578 = vrot.lane.b32.xlu0 %v576, 32
    %v579 = vpop.permute.xlu0 %578
    %v581 = vadd.f32 %v571, %v579
    %v582 = vtanh.pop %v581
    %584 = vrot.lane.b32.xlu0 %v582, 64
    %v585 = vpop.permute.xlu0 %584
    %v587 = vmul.f32 %v569, %v585
    %589 = vrot.lane.b32.xlu0 %v587, 32
    %v590 = vpop.permute.xlu0 %589
    %592 = vst.msk [vmem:[#allocation3 + $0x3] sm:$0x1] %vm270, %v590
    %v593 = vld [vmem:[#allocation2 + $0x4] sm:$0x1]
    %v594 = vld [vmem:[#allocation9] sm:$0xff]
    %v595 = vld [vmem:[#allocation9 + $0x8] sm:$0xff]
    %v596 = vld [vmem:[#allocation9 + $0x10] sm:$0xff]
    %v597 = vld [vmem:[#allocation9 + $0x18] sm:$0xff]
    %v598 = vsel %vm167, %v590, 0
    %600 = vmatprep.subr.mxu0 0.0
    %601 = vmatpush1.msra.mxu0 %v594
    %602 = vmatprep.subr.mxu0 0.0
    %603 = vmatpush1.msra.mxu0 %v595
    %604 = vmatprep.subr.mxu0 0.0
    %605 = vmatpush1.msra.mxu0 %v596
    %606 = vmatprep.subr.mxu0 0.0
    %607 = vmatpush1.msra.mxu0 %v597
    %608 = vmatprep.subr.mxu0 0.0
    %609 = vmatpush1.msra.mxu0 0.0
    %610 = vmatprep.subr.mxu0 0.0
    %611 = vmatpush1.msra.mxu0 0.0
    %612 = vmatprep.subr.mxu0 0.0
    %613 = vmatpush1.msra.mxu0 0.0
    %614 = vmatprep.subr.mxu0 0.0
    %615 = vmatpush1.msra.mxu0 0.0
    %616 = vmatprep.subr.mxu0 0.0
    %617 = vmatpush1.msra.mxu0 0.0
    %618 = vmatprep.subr.mxu0 0.0
    %619 = vmatpush1.msra.mxu0 0.0
    %620 = vmatprep.subr.mxu0 0.0
    %621 = vmatpush1.msra.mxu0 0.0
    %622 = vmatprep.subr.mxu0 0.0
    %623 = vmatpush1.msra.mxu0 0.0
    %624 = vmatprep.subr.mxu0 0.0
    %625 = vmatpush1.msra.mxu0 0.0
    %626 = vmatprep.subr.mxu0 0.0
    %627 = vmatpush1.msra.mxu0 0.0
    %628 = vmatprep.subr.mxu0 0.0
    %629 = vmatpush1.msra.mxu0 0.0
    %630 = vmatprep.subr.mxu0 0.0
    %631 = vmatpush1.msra.mxu0 0.0
    %632 = vmatprep.subr.mxu0 0.0
    %633 = vmatpush1.msra.mxu0 0.0
    %634 = vmatprep.subr.mxu0 0.0
    %635 = vmatpush1.msra.mxu0 0.0
    %636 = vmatprep.subr.mxu0 0.0
    %637 = vmatpush1.msra.mxu0 0.0
    %638 = vmatprep.subr.mxu0 0.0
    %639 = vmatpush1.msra.mxu0 0.0
    %640 = vmatprep.subr.mxu0 0.0
    %641 = vmatpush1.msra.mxu0 0.0
    %642 = vmatprep.subr.mxu0 0.0
    %643 = vmatpush1.msra.mxu0 0.0
    %644 = vmatprep.subr.mxu0 0.0
    %645 = vmatpush1.msra.mxu0 0.0
    %646 = vmatprep.subr.mxu0 0.0
    %647 = vmatpush1.msra.mxu0 0.0
    %648 = vmatprep.subr.mxu0 0.0
    %649 = vmatpush1.msra.mxu0 0.0
    %650 = vmatprep.subr.mxu0 0.0
    %651 = vmatpush1.msra.mxu0 0.0
    %652 = vmatprep.subr.mxu0 0.0
    %653 = vmatpush1.msra.mxu0 0.0
    %654 = vmatprep.subr.mxu0 0.0
    %655 = vmatpush1.msra.mxu0 0.0
    %656 = vmatprep.subr.mxu0 0.0
    %657 = vmatpush1.msra.mxu0 0.0
    %658 = vmatprep.subr.mxu0 0.0
    %659 = vmatpush1.msra.mxu0 0.0
    %660 = vmatprep.subr.mxu0 0.0
    %661 = vmatpush1.msra.mxu0 0.0
    %662 = vmatprep.subr.mxu0 0.0
    %663 = vmatpush1.msra.mxu0 0.0
    %664 = vmatprep.mubr.f32.mxu0 0.0
    %665 = vmatmul.mubr.f32.gmra.mrb[0].mxu0 %v598
    %v666 = vpop.f32.mrb[0].mxu0
    %v667 = vadd.f32 0.0, %v666
    %v668 = vpop.f32.mrb[0].mxu0
    %669 = vdwg.mxu0
    %v670 = vadd.f32 %v593, %v667
    %v671 = vsub.f32 0.0, %v670
    %v672 = vmul.f32 %v671, 1.442695
    %v673 = vpow.pop %v672
    %v674 = vadd.f32 %v673, 1.0
    %v675 = vrcp.pop %v674
    %v676 = vmul.f32 1.0, %v675
    %v677 = vtanh.pop %v670
    %v678 = vmul.f32 %v676, %v581
    %680 = vrot.lane.b32.xlu0 %v677, 64
    %v681 = vpop.permute.xlu0 %680
    %v683 = vmul.f32 %v676, %v681
    %685 = vrot.lane.b32.xlu0 %v683, 32
    %v686 = vpop.permute.xlu0 %685
    %v688 = vadd.f32 %v678, %v686
    %v689 = vtanh.pop %v688
    %691 = vrot.lane.b32.xlu0 %v689, 64
    %v692 = vpop.permute.xlu0 %691
    %v694 = vmul.f32 %v676, %v692
    %696 = vrot.lane.b32.xlu0 %v694, 32
    %v697 = vpop.permute.xlu0 %696
    %699 = vst.msk [vmem:[#allocation3 + $0x4] sm:$0x1] %vm270, %v697
    %v700 = vld [vmem:[#allocation2 + $0x5] sm:$0x1]
    %v701 = vld [vmem:[#allocation9] sm:$0xff]
    %v702 = vld [vmem:[#allocation9 + $0x8] sm:$0xff]
    %v703 = vld [vmem:[#allocation9 + $0x10] sm:$0xff]
    %v704 = vld [vmem:[#allocation9 + $0x18] sm:$0xff]
    %v705 = vsel %vm167, %v697, 0
    %707 = vmatprep.subr.mxu0 0.0
    %708 = vmatpush1.msra.mxu0 %v701
    %709 = vmatprep.subr.mxu0 0.0
    %710 = vmatpush1.msra.mxu0 %v702
    %711 = vmatprep.subr.mxu0 0.0
    %712 = vmatpush1.msra.mxu0 %v703
    %713 = vmatprep.subr.mxu0 0.0
    %714 = vmatpush1.msra.mxu0 %v704
    %715 = vmatprep.subr.mxu0 0.0
    %716 = vmatpush1.msra.mxu0 0.0
    %717 = vmatprep.subr.mxu0 0.0
    %718 = vmatpush1.msra.mxu0 0.0
    %719 = vmatprep.subr.mxu0 0.0
    %720 = vmatpush1.msra.mxu0 0.0
    %721 = vmatprep.subr.mxu0 0.0
    %722 = vmatpush1.msra.mxu0 0.0
    %723 = vmatprep.subr.mxu0 0.0
    %724 = vmatpush1.msra.mxu0 0.0
    %725 = vmatprep.subr.mxu0 0.0
    %726 = vmatpush1.msra.mxu0 0.0
    %727 = vmatprep.subr.mxu0 0.0
    %728 = vmatpush1.msra.mxu0 0.0
    %729 = vmatprep.subr.mxu0 0.0
    %730 = vmatpush1.msra.mxu0 0.0
    %731 = vmatprep.subr.mxu0 0.0
    %732 = vmatpush1.msra.mxu0 0.0
    %733 = vmatprep.subr.mxu0 0.0
    %734 = vmatpush1.msra.mxu0 0.0
    %735 = vmatprep.subr.mxu0 0.0
    %736 = vmatpush1.msra.mxu0 0.0
    %737 = vmatprep.subr.mxu0 0.0
    %738 = vmatpush1.msra.mxu0 0.0
    %739 = vmatprep.subr.mxu0 0.0
    %740 = vmatpush1.msra.mxu0 0.0
    %741 = vmatprep.subr.mxu0 0.0
    %742 = vmatpush1.msra.mxu0 0.0
    %743 = vmatprep.subr.mxu0 0.0
    %744 = vmatpush1.msra.mxu0 0.0
    %745 = vmatprep.subr.mxu0 0.0
    %746 = vmatpush1.msra.mxu0 0.0
    %747 = vmatprep.subr.mxu0 0.0
    %748 = vmatpush1.msra.mxu0 0.0
    %749 = vmatprep.subr.mxu0 0.0
    %750 = vmatpush1.msra.mxu0 0.0
    %751 = vmatprep.subr.mxu0 0.0
    %752 = vmatpush1.msra.mxu0 0.0
    %753 = vmatprep.subr.mxu0 0.0
    %754 = vmatpush1.msra.mxu0 0.0
    %755 = vmatprep.subr.mxu0 0.0
    %756 = vmatpush1.msra.mxu0 0.0
    %757 = vmatprep.subr.mxu0 0.0
    %758 = vmatpush1.msra.mxu0 0.0
    %759 = vmatprep.subr.mxu0 0.0
    %760 = vmatpush1.msra.mxu0 0.0
    %761 = vmatprep.subr.mxu0 0.0
    %762 = vmatpush1.msra.mxu0 0.0
    %763 = vmatprep.subr.mxu0 0.0
    %764 = vmatpush1.msra.mxu0 0.0
    %765 = vmatprep.subr.mxu0 0.0
    %766 = vmatpush1.msra.mxu0 0.0
    %767 = vmatprep.subr.mxu0 0.0
    %768 = vmatpush1.msra.mxu0 0.0
    %769 = vmatprep.subr.mxu0 0.0
    %770 = vmatpush1.msra.mxu0 0.0
    %771 = vmatprep.mubr.f32.mxu0 0.0
    %772 = vmatmul.mubr.f32.gmra.mrb[0].mxu0 %v705
    %v773 = vpop.f32.mrb[0].mxu0
    %v774 = vadd.f32 0.0, %v773
    %v775 = vpop.f32.mrb[0].mxu0
    %776 = vdwg.mxu0
    %v777 = vadd.f32 %v700, %v774
    %v778 = vsub.f32 0.0, %v777
    %v779 = vmul.f32 %v778, 1.442695
    %v780 = vpow.pop %v779
    %v781 = vadd.f32 %v780, 1.0
    %v782 = vrcp.pop %v781
    %v783 = vmul.f32 1.0, %v782
    %v784 = vtanh.pop %v777
    %v785 = vmul.f32 %v783, %v688
    %787 = vrot.lane.b32.xlu0 %v784, 64
    %v788 = vpop.permute.xlu0 %787
    %v790 = vmul.f32 %v783, %v788
    %792 = vrot.lane.b32.xlu0 %v790, 32
    %v793 = vpop.permute.xlu0 %792
    %v795 = vadd.f32 %v785, %v793
    %v796 = vtanh.pop %v795
    %798 = vrot.lane.b32.xlu0 %v796, 64
    %v799 = vpop.permute.xlu0 %798
    %v801 = vmul.f32 %v783, %v799
    %803 = vrot.lane.b32.xlu0 %v801, 32
    %v804 = vpop.permute.xlu0 %803
    %806 = vst.msk [vmem:[#allocation3 + $0x5] sm:$0x1] %vm270, %v804
    %v807 = vld [vmem:[#allocation2 + $0x6] sm:$0x1]
    %v808 = vld [vmem:[#allocation9] sm:$0xff]
    %v809 = vld [vmem:[#allocation9 + $0x8] sm:$0xff]
    %v810 = vld [vmem:[#allocation9 + $0x10] sm:$0xff]
    %v811 = vld [vmem:[#allocation9 + $0x18] sm:$0xff]
    %v812 = vsel %vm167, %v804, 0
    %814 = vmatprep.subr.mxu0 0.0
    %815 = vmatpush1.msra.mxu0 %v808
    %816 = vmatprep.subr.mxu0 0.0
    %817 = vmatpush1.msra.mxu0 %v809
    %818 = vmatprep.subr.mxu0 0.0
    %819 = vmatpush1.msra.mxu0 %v810
    %820 = vmatprep.subr.mxu0 0.0
    %821 = vmatpush1.msra.mxu0 %v811
    %822 = vmatprep.subr.mxu0 0.0
    %823 = vmatpush1.msra.mxu0 0.0
    %824 = vmatprep.subr.mxu0 0.0
    %825 = vmatpush1.msra.mxu0 0.0
    %826 = vmatprep.subr.mxu0 0.0
    %827 = vmatpush1.msra.mxu0 0.0
    %828 = vmatprep.subr.mxu0 0.0
    %829 = vmatpush1.msra.mxu0 0.0
    %830 = vmatprep.subr.mxu0 0.0
    %831 = vmatpush1.msra.mxu0 0.0
    %832 = vmatprep.subr.mxu0 0.0
    %833 = vmatpush1.msra.mxu0 0.0
    %834 = vmatprep.subr.mxu0 0.0
    %835 = vmatpush1.msra.mxu0 0.0
    %836 = vmatprep.subr.mxu0 0.0
    %837 = vmatpush1.msra.mxu0 0.0
    %838 = vmatprep.subr.mxu0 0.0
    %839 = vmatpush1.msra.mxu0 0.0
    %840 = vmatprep.subr.mxu0 0.0
    %841 = vmatpush1.msra.mxu0 0.0
    %842 = vmatprep.subr.mxu0 0.0
    %843 = vmatpush1.msra.mxu0 0.0
    %844 = vmatprep.subr.mxu0 0.0
    %845 = vmatpush1.msra.mxu0 0.0
    %846 = vmatprep.subr.mxu0 0.0
    %847 = vmatpush1.msra.mxu0 0.0
    %848 = vmatprep.subr.mxu0 0.0
    %849 = vmatpush1.msra.mxu0 0.0
    %850 = vmatprep.subr.mxu0 0.0
    %851 = vmatpush1.msra.mxu0 0.0
    %852 = vmatprep.subr.mxu0 0.0
    %853 = vmatpush1.msra.mxu0 0.0
    %854 = vmatprep.subr.mxu0 0.0
    %855 = vmatpush1.msra.mxu0 0.0
    %856 = vmatprep.subr.mxu0 0.0
    %857 = vmatpush1.msra.mxu0 0.0
    %858 = vmatprep.subr.mxu0 0.0
    %859 = vmatpush1.msra.mxu0 0.0
    %860 = vmatprep.subr.mxu0 0.0
    %861 = vmatpush1.msra.mxu0 0.0
    %862 = vmatprep.subr.mxu0 0.0
    %863 = vmatpush1.msra.mxu0 0.0
    %864 = vmatprep.subr.mxu0 0.0
    %865 = vmatpush1.msra.mxu0 0.0
    %866 = vmatprep.subr.mxu0 0.0
    %867 = vmatpush1.msra.mxu0 0.0
    %868 = vmatprep.subr.mxu0 0.0
    %869 = vmatpush1.msra.mxu0 0.0
    %870 = vmatprep.subr.mxu0 0.0
    %871 = vmatpush1.msra.mxu0 0.0
    %872 = vmatprep.subr.mxu0 0.0
    %873 = vmatpush1.msra.mxu0 0.0
    %874 = vmatprep.subr.mxu0 0.0
    %875 = vmatpush1.msra.mxu0 0.0
    %876 = vmatprep.subr.mxu0 0.0
    %877 = vmatpush1.msra.mxu0 0.0
    %878 = vmatprep.mubr.f32.mxu0 0.0
    %879 = vmatmul.mubr.f32.gmra.mrb[0].mxu0 %v812
    %v880 = vpop.f32.mrb[0].mxu0
    %v881 = vadd.f32 0.0, %v880
    %v882 = vpop.f32.mrb[0].mxu0
    %883 = vdwg.mxu0
    %v884 = vadd.f32 %v807, %v881
    %v885 = vsub.f32 0.0, %v884
    %v886 = vmul.f32 %v885, 1.442695
    %v887 = vpow.pop %v886
    %v888 = vadd.f32 %v887, 1.0
    %v889 = vrcp.pop %v888
    %v890 = vmul.f32 1.0, %v889
    %v891 = vtanh.pop %v884
    %v892 = vmul.f32 %v890, %v795
    %894 = vrot.lane.b32.xlu0 %v891, 64
    %v895 = vpop.permute.xlu0 %894
    %v897 = vmul.f32 %v890, %v895
    %899 = vrot.lane.b32.xlu0 %v897, 32
    %v900 = vpop.permute.xlu0 %899
    %v902 = vadd.f32 %v892, %v900
    %v903 = vtanh.pop %v902
    %905 = vrot.lane.b32.xlu0 %v903, 64
    %v906 = vpop.permute.xlu0 %905
    %v908 = vmul.f32 %v890, %v906
    %910 = vrot.lane.b32.xlu0 %v908, 32
    %v911 = vpop.permute.xlu0 %910
    %913 = vst.msk [vmem:[#allocation3 + $0x6] sm:$0x1] %vm270, %v911
    %v914 = vld [vmem:[#allocation2 + $0x7] sm:$0x1]
    %v915 = vld [vmem:[#allocation9] sm:$0xff]
    %v916 = vld [vmem:[#allocation9 + $0x8] sm:$0xff]
    %v917 = vld [vmem:[#allocation9 + $0x10] sm:$0xff]
    %v918 = vld [vmem:[#allocation9 + $0x18] sm:$0xff]
    %v919 = vsel %vm167, %v911, 0
    %921 = vmatprep.subr.mxu0 0.0
    %922 = vmatpush1.msra.mxu0 %v915
    %923 = vmatprep.subr.mxu0 0.0
    %924 = vmatpush1.msra.mxu0 %v916
    %925 = vmatprep.subr.mxu0 0.0
    %926 = vmatpush1.msra.mxu0 %v917
    %927 = vmatprep.subr.mxu0 0.0
    %928 = vmatpush1.msra.mxu0 %v918
    %929 = vmatprep.subr.mxu0 0.0
    %930 = vmatpush1.msra.mxu0 0.0
    %931 = vmatprep.subr.mxu0 0.0
    %932 = vmatpush1.msra.mxu0 0.0
    %933 = vmatprep.subr.mxu0 0.0
    %934 = vmatpush1.msra.mxu0 0.0
    %935 = vmatprep.subr.mxu0 0.0
    %936 = vmatpush1.msra.mxu0 0.0
    %937 = vmatprep.subr.mxu0 0.0
    %938 = vmatpush1.msra.mxu0 0.0
    %939 = vmatprep.subr.mxu0 0.0
    %940 = vmatpush1.msra.mxu0 0.0
    %941 = vmatprep.subr.mxu0 0.0
    %942 = vmatpush1.msra.mxu0 0.0
    %943 = vmatprep.subr.mxu0 0.0
    %944 = vmatpush1.msra.mxu0 0.0
    %945 = vmatprep.subr.mxu0 0.0
    %946 = vmatpush1.msra.mxu0 0.0
    %947 = vmatprep.subr.mxu0 0.0
    %948 = vmatpush1.msra.mxu0 0.0
    %949 = vmatprep.subr.mxu0 0.0
    %950 = vmatpush1.msra.mxu0 0.0
    %951 = vmatprep.subr.mxu0 0.0
    %952 = vmatpush1.msra.mxu0 0.0
    %953 = vmatprep.subr.mxu0 0.0
    %954 = vmatpush1.msra.mxu0 0.0
    %955 = vmatprep.subr.mxu0 0.0
    %956 = vmatpush1.msra.mxu0 0.0
    %957 = vmatprep.subr.mxu0 0.0
    %958 = vmatpush1.msra.mxu0 0.0
    %959 = vmatprep.subr.mxu0 0.0
    %960 = vmatpush1.msra.mxu0 0.0
    %961 = vmatprep.subr.mxu0 0.0
    %962 = vmatpush1.msra.mxu0 0.0
    %963 = vmatprep.subr.mxu0 0.0
    %964 = vmatpush1.msra.mxu0 0.0
    %965 = vmatprep.subr.mxu0 0.0
    %966 = vmatpush1.msra.mxu0 0.0
    %967 = vmatprep.subr.mxu0 0.0
    %968 = vmatpush1.msra.mxu0 0.0
    %969 = vmatprep.subr.mxu0 0.0
    %970 = vmatpush1.msra.mxu0 0.0
    %971 = vmatprep.subr.mxu0 0.0
    %972 = vmatpush1.msra.mxu0 0.0
    %973 = vmatprep.subr.mxu0 0.0
    %974 = vmatpush1.msra.mxu0 0.0
    %975 = vmatprep.subr.mxu0 0.0
    %976 = vmatpush1.msra.mxu0 0.0
    %977 = vmatprep.subr.mxu0 0.0
    %978 = vmatpush1.msra.mxu0 0.0
    %979 = vmatprep.subr.mxu0 0.0
    %980 = vmatpush1.msra.mxu0 0.0
    %981 = vmatprep.subr.mxu0 0.0
    %982 = vmatpush1.msra.mxu0 0.0
    %983 = vmatprep.subr.mxu0 0.0
    %984 = vmatpush1.msra.mxu0 0.0
    %985 = vmatprep.mubr.f32.mxu0 0.0
    %986 = vmatmul.mubr.f32.gmra.mrb[0].mxu0 %v919
    %v987 = vpop.f32.mrb[0].mxu0
    %v988 = vadd.f32 0.0, %v987
    %v989 = vpop.f32.mrb[0].mxu0
    %990 = vdwg.mxu0
    %v991 = vadd.f32 %v914, %v988
    %v992 = vsub.f32 0.0, %v991
    %v993 = vmul.f32 %v992, 1.442695
    %v994 = vpow.pop %v993
    %v995 = vadd.f32 %v994, 1.0
    %v996 = vrcp.pop %v995
    %v997 = vmul.f32 1.0, %v996
    %v998 = vtanh.pop %v991
    %v999 = vmul.f32 %v997, %v902
    %1001 = vrot.lane.b32.xlu0 %v998, 64
    %v1002 = vpop.permute.xlu0 %1001
    %v1004 = vmul.f32 %v997, %v1002
    %1006 = vrot.lane.b32.xlu0 %v1004, 32
    %v1007 = vpop.permute.xlu0 %1006
    %v1009 = vadd.f32 %v999, %v1007
    %v1010 = vtanh.pop %v1009
    %1012 = vrot.lane.b32.xlu0 %v1010, 64
    %v1013 = vpop.permute.xlu0 %1012
    %v1015 = vmul.f32 %v997, %v1013
    %1017 = vrot.lane.b32.xlu0 %v1015, 32
    %v1018 = vpop.permute.xlu0 %1017
    %1020 = vst.msk [vmem:[#allocation3 + $0x7] sm:$0x1] %vm270, %v1018
    %v1021 = vld [vmem:[#allocation3] sm:$0xff]
    %v1022 = vld [vmem:[#allocation10] sm:$0xff]
    %v1023 = vld [vmem:[#allocation10 + $0x8] sm:$0xff]
    %v1024 = vld [vmem:[#allocation10 + $0x10] sm:$0xff]
    %v1025 = vld [vmem:[#allocation10 + $0x18] sm:$0xff]
    %v1026 = vld [vmem:[%s5] sm:$0x1]
    %v1028 = vlaneseq
    %v1029 = vshrl.u32 %v1028, 7
    %v1030 = vsub.s32 0, %v1029
    %v1031 = vrot.slane %v1026, %v1030
    %v1034 = vsel %vm167, %v1021, 0
    %1036 = vmatprep.subr.mxu0 0.0
    %1037 = vmatpush1.msra.mxu0 %v1022
    %1038 = vmatprep.subr.mxu0 0.0
    %1039 = vmatpush1.msra.mxu0 %v1023
    %1040 = vmatprep.subr.mxu0 0.0
    %1041 = vmatpush1.msra.mxu0 %v1024
    %1042 = vmatprep.subr.mxu0 0.0
    %1043 = vmatpush1.msra.mxu0 %v1025
    %1044 = vmatprep.subr.mxu0 0.0
    %1045 = vmatpush1.msra.mxu0 0.0
    %1046 = vmatprep.subr.mxu0 0.0
    %1047 = vmatpush1.msra.mxu0 0.0
    %1048 = vmatprep.subr.mxu0 0.0
    %1049 = vmatpush1.msra.mxu0 0.0
    %1050 = vmatprep.subr.mxu0 0.0
    %1051 = vmatpush1.msra.mxu0 0.0
    %1052 = vmatprep.subr.mxu0 0.0
    %1053 = vmatpush1.msra.mxu0 0.0
    %1054 = vmatprep.subr.mxu0 0.0
    %1055 = vmatpush1.msra.mxu0 0.0
    %1056 = vmatprep.subr.mxu0 0.0
    %1057 = vmatpush1.msra.mxu0 0.0
    %1058 = vmatprep.subr.mxu0 0.0
    %1059 = vmatpush1.msra.mxu0 0.0
    %1060 = vmatprep.subr.mxu0 0.0
    %1061 = vmatpush1.msra.mxu0 0.0
    %1062 = vmatprep.subr.mxu0 0.0
    %1063 = vmatpush1.msra.mxu0 0.0
    %1064 = vmatprep.subr.mxu0 0.0
    %1065 = vmatpush1.msra.mxu0 0.0
    %1066 = vmatprep.subr.mxu0 0.0
    %1067 = vmatpush1.msra.mxu0 0.0
    %1068 = vmatprep.subr.mxu0 0.0
    %1069 = vmatpush1.msra.mxu0 0.0
    %1070 = vmatprep.subr.mxu0 0.0
    %1071 = vmatpush1.msra.mxu0 0.0
    %1072 = vmatprep.subr.mxu0 0.0
    %1073 = vmatpush1.msra.mxu0 0.0
    %1074 = vmatprep.subr.mxu0 0.0
    %1075 = vmatpush1.msra.mxu0 0.0
    %1076 = vmatprep.subr.mxu0 0.0
    %1077 = vmatpush1.msra.mxu0 0.0
    %1078 = vmatprep.subr.mxu0 0.0
    %1079 = vmatpush1.msra.mxu0 0.0
    %1080 = vmatprep.subr.mxu0 0.0
    %1081 = vmatpush1.msra.mxu0 0.0
    %1082 = vmatprep.subr.mxu0 0.0
    %1083 = vmatpush1.msra.mxu0 0.0
    %1084 = vmatprep.subr.mxu0 0.0
    %1085 = vmatpush1.msra.mxu0 0.0
    %1086 = vmatprep.subr.mxu0 0.0
    %1087 = vmatpush1.msra.mxu0 0.0
    %1088 = vmatprep.subr.mxu0 0.0
    %1089 = vmatpush1.msra.mxu0 0.0
    %1090 = vmatprep.subr.mxu0 0.0
    %1091 = vmatpush1.msra.mxu0 0.0
    %1092 = vmatprep.subr.mxu0 0.0
    %1093 = vmatpush1.msra.mxu0 0.0
    %1094 = vmatprep.subr.mxu0 0.0
    %1095 = vmatpush1.msra.mxu0 0.0
    %1096 = vmatprep.subr.mxu0 0.0
    %1097 = vmatpush1.msra.mxu0 0.0
    %1098 = vmatprep.subr.mxu0 0.0
    %1099 = vmatpush1.msra.mxu0 0.0
    %1100 = vmatprep.mubr.f32.mxu0 0.0
    %1101 = vmatmul.mubr.f32.gmra.mrb[0].mxu0 %v1034
    %v1102 = vpop.f32.mrb[0].mxu0
    %v1103 = vadd.f32 %v1031, %v1102
    %v1104 = vpop.f32.mrb[0].mxu0
    %1105 = vdwg.mxu0
    %1106 = vst [vmem:[#allocation12] sm:$0xff] %v1103
    // Predicated region
    $region42: #{tpu_custom_call.1} parent=1 // pred_check
      _
    $region43: #{tpu_custom_call.1} parent=1 // pred_check_branch
      %1108 = sbr.rel (0) target = $region45
    $region44: #{tpu_custom_call.1} parent=1 // pred_region
      %s1110 = ssub.s32 128, 128
      %1111 = vsyncadd [#allocation6], %s1110
      %s1113 = sshll.u32 [#allocation12], 4
      %s1114 = int_to_ptr.vmem [resolvable:$true] %s1113
      %1116 = dma.vmem_to_hbm [thread:$0]  %s1114, 128, %s6, [#allocation6]
    $region45: #{tpu_custom_call.1} parent=1 // pred_fallthru
      _
    // Predicated region
    $region46: #{tpu_custom_call.1} parent=1 // pred_check
      _
    $region47: #{tpu_custom_call.1} parent=1 // pred_check_branch
      %1118 = sbr.rel (0) target = $region49
    $region48: #{tpu_custom_call.1} parent=1 // pred_region
      %1119 = dma.done [#allocation6], 128
    $region49: #{tpu_custom_call.1} parent=1 // pred_fallthru
      _
    %1120 = vsyncpa [#allocation5], 1
    %1121 = vsyncpa [#allocation8], 1
    %1122 = vsyncpa [#allocation11], 1
    %1123 = vsyncpa [#allocation6], 1

</llo_original>
